<compile_context>
chip_gen: v7x
topology: tpu7x:2x2x1
jax: 0.10.0
libtpu: 0.0.40
codegen_flags: <defaults>
</compile_context>

<pallas_src>
import functools

import jax
import jax.numpy as jnp
from jax.experimental import pallas as pl
from jax.experimental.pallas import tpu as pltpu

KH = KW = 5
PAD = 2


def _siren_block_kernel(x_ref, m1_ref, m2_ref, m3_ref,
                        o1_ref, o2_ref, o3_ref,
                        p1_ref, p2_ref, p3_ref,
                        *, omega, H, W, bt, cins, couts):
    """bt batch elements per grid step, all three convs + both sin() fused.

    x_ref : (bt, H, W*Cin)             conv1 input, NHWC rows flattened (lane-dense)
    mk_ref: (KH, Wp*cin_k, W*cout_k)   banded weights (kx + channels folded into K)
    ok_ref: (bt, H, W*cout_k)          pre-activation outputs siren_1/2/3 (lane-dense)
    pk_ref: (bt, Hp, Wp*cin_k)         per-layer zero-padded activation scratch
    """
    wp = W + 2 * PAD

    def conv5x5(act, cin, m_ref, pad_ref, cout):
        # act: (bt, H, W*cin) unpadded activation (sin already applied upstream).
        dt = pad_ref.dtype
        # Halo-only zeroing: the interior is fully overwritten just below.
        pad_ref[:, :PAD, :] = jnp.zeros((bt, PAD, wp * cin), dt)
        pad_ref[:, PAD + H:, :] = jnp.zeros((bt, PAD, wp * cin), dt)
        pad_ref[:, PAD:PAD + H, :PAD * cin] = jnp.zeros((bt, H, PAD * cin), dt)
        pad_ref[:, PAD:PAD + H, (PAD + W) * cin:] = jnp.zeros((bt, H, PAD * cin), dt)
        pad_ref[:, PAD:PAD + H, PAD * cin:(PAD + W) * cin] = act.astype(dt)

        acc = jnp.zeros((bt * H, W * cout), jnp.float32)
        for ky in range(KH):   # 5 row taps; kx and cin live in the matmul K dimension
            lhs = pad_ref[:, ky:ky + H, :].reshape(bt * H, wp * cin)   # M = bt*H
            acc = acc + jnp.dot(lhs, m_ref[ky],
                                preferred_element_type=jnp.float32)
        return acc.reshape(bt, H, W * cout)

    y1 = conv5x5(x_ref[...].astype(jnp.float32), cins[0], m1_ref, p1_ref, couts[0])
    o1_ref[...] = y1.astype(o1_ref.dtype)                                # siren_1

    y2 = conv5x5(jnp.sin(omega * y1), cins[1], m2_ref, p2_ref, couts[1])
    o2_ref[...] = y2.astype(o2_ref.dtype)                                # siren_2

    # TODO(synk): conv3's matmul N = W*C3 = 16 is lane-sparse (masked vst); if spatial
    # size or batch grow, emit o3 as an (H, bt*W) lane-dense slab and reshape outside.
    y3 = conv5x5(jnp.sin(omega * y2), cins[2], m3_ref, p3_ref, couts[2])
    o3_ref[...] = y3.astype(o3_ref.dtype)                                # siren_3


def _banded_weight(w_oihw, W):
    """OIHW (Cout, Cin, KH, KW) -> M[ky, wp*Cin + c, w*Cout + co].

    M[ky, (w+kx)*Cin + c, w*Cout + co] = w[co, c, ky, kx], zero outside the 5-tap band.
    Folds the kx taps, input channels and zero W-padding into one matmul per kernel row.
    """
    cout, cin, kh, kw = w_oihw.shape
    wp = W + 2 * PAD
    w_hxco = jnp.transpose(w_oihw, (2, 3, 1, 0))                     # (KH, KW, Cin, Cout)
    onehot = (jnp.arange(wp)[None, :, None]
              == (jnp.arange(W)[None, None, :] + jnp.arange(kw)[:, None, None])
              ).astype(w_oihw.dtype)                                 # (KW, Wp, W)
    m = jnp.einsum('hxco,xpw->hpcwo', w_hxco, onehot)                # (KH, Wp, Cin, W, Cout)
    return m.reshape(kh, wp * cin, W * cout)


def _pick_batch_tile(n, h, m_target=128):
    """Largest divisor bt of n with bt*h <= m_target (cap the MXU M tile), while keeping
    n//bt >= 2 whenever n >= 2 so the 'parallel' grid axis still feeds both v7x cores."""
    best = 1
    for bt in range(1, n + 1):
        if n % bt or bt * h > m_target:
            continue
        if n >= 2 and n // bt < 2:
            continue
        best = bt
    return best


def siren_block_forward_nhwc(x_rows, w1_oihw, w2_oihw, w3_oihw, omega,
                             matmul_dtype=jnp.float32):
    """NHWC-native hot path.  x_rows: (N, H, W*Cin) lane-dense; returns the three
    lane-dense pre-activation slabs (siren_1, siren_2, siren_3) as (N, H, W*Ck)."""
    N, H, WC = x_rows.shape
    Cin = w1_oihw.shape[1]
    W = WC // Cin
    C1, C2, C3 = w1_oihw.shape[0], w2_oihw.shape[0], w3_oihw.shape[0]
    assert WC == W * Cin and w2_oihw.shape[1] == C1 and w3_oihw.shape[1] == C2
    Hp, Wp = H + 2 * PAD, W + 2 * PAD

    bt = _pick_batch_tile(N, H)

    # Tiny layout glue (weights are KB-scale): fold kx + Cin + zero W-padding into K.
    m1 = _banded_weight(w1_oihw, W).astype(matmul_dtype)
    m2 = _banded_weight(w2_oihw, W).astype(matmul_dtype)
    m3 = _banded_weight(w3_oihw, W).astype(matmul_dtype)

    kernel = functools.partial(_siren_block_kernel, omega=float(omega), H=H, W=W, bt=bt,
                               cins=(Cin, C1, C2), couts=(C1, C2, C3))

    o1, o2, o3 = pl.pallas_call(
        kernel,
        out_shape=(jax.ShapeDtypeStruct((N, H, W * C1), jnp.float32),
                   jax.ShapeDtypeStruct((N, H, W * C2), jnp.float32),
                   jax.ShapeDtypeStruct((N, H, W * C3), jnp.float32)),
        grid=(N // bt,),
        in_specs=[
            pl.BlockSpec((bt, H, W * Cin), lambda n: (n, 0, 0)),
            # Constant-index weights (never re-fetched, but double-buffered by Pallas,
            # ~2x1.3 MiB today).  TODO(synk): single-buffer via pipeline_mode=
            # pl.Buffered(1) / one-shot manual DMA if channel counts grow on v7x.
            pl.BlockSpec((KH, Wp * Cin, W * C1), lambda n: (0, 0, 0)),
            pl.BlockSpec((KH, Wp * C1, W * C2), lambda n: (0, 0, 0)),
            pl.BlockSpec((KH, Wp * C2, W * C3), lambda n: (0, 0, 0)),
        ],
        out_specs=(
            pl.BlockSpec((bt, H, W * C1), lambda n: (n, 0, 0)),
            pl.BlockSpec((bt, H, W * C2), lambda n: (n, 0, 0)),
            pl.BlockSpec((bt, H, W * C3), lambda n: (n, 0, 0)),
        ),
        scratch_shapes=[pltpu.VMEM((bt, Hp, Wp * Cin), matmul_dtype),
                        pltpu.VMEM((bt, Hp, Wp * C1), matmul_dtype),
                        pltpu.VMEM((bt, Hp, Wp * C2), matmul_dtype)],
        compiler_params=pltpu.CompilerParams(
            dimension_semantics=("parallel",),        # shard batch tiles across TCs (v7x)
            vmem_limit_bytes=32 * 1024 * 1024),       # actual footprint is a few MiB
    )(x_rows, m1, m2, m3)
    return o1, o2, o3


def siren_block_forward(x_nchw, w1_oihw, w2_oihw, w3_oihw, omega,
                        matmul_dtype=jnp.float32):
    """PyTorch-parity wrapper (NCHW in / NCHW out).  Matches SirenBlock.forward, which
    returns (x, siren_1, siren_2, siren_3) where `x` at return time IS the conv3 output
    (== siren_3, since x is reassigned layer by layer and never sin-activated after
    conv3).  The transposes here are layout glue only; NHWC callers should use
    siren_block_forward_nhwc directly to keep them out of the hot path."""
    N, Cin, H, W = x_nchw.shape
    C1, C2, C3 = w1_oihw.shape[0], w2_oihw.shape[0], w3_oihw.shape[0]
    assert w1_oihw.shape[1] == Cin

    x_rows = jnp.transpose(x_nchw, (0, 2, 3, 1)).reshape(N, H, W * Cin)
    o1, o2, o3 = siren_block_forward_nhwc(x_rows, w1_oihw, w2_oihw, w3_oihw, omega,
                                          matmul_dtype=matmul_dtype)

    def to_nchw(o, c):
        return jnp.transpose(o.reshape(N, H, W, c), (0, 3, 1, 2))

    s1, s2, s3 = to_nchw(o1, C1), to_nchw(o2, C2), to_nchw(o3, C3)
    return s3, s1, s2, s3


def _init_conv_weight(key, out_ch, in_ch):
    """Deterministic init mimicking PyTorch Conv2d default (kaiming_uniform, a=sqrt(5))."""
    fan_in = in_ch * KH * KW
    bound = 1.0 / (fan_in ** 0.5)
    return jax.random.uniform(key, (out_ch, in_ch, KH, KW), jnp.float32, -bound, bound)


def _conv_ref_nchw(x_nchw, w_oihw):
    return jax.lax.conv_general_dilated(
        x_nchw, w_oihw, window_strides=(1, 1),
        padding=((PAD, PAD), (PAD, PAD)),
        dimension_numbers=("NCHW", "OIHW", "NCHW"))


if __name__ == "__main__":
    batch, in_channels, out_channels, H, W = 2, 4, 8, 16, 16
    omega = 30.0

    key = jax.random.PRNGKey(0)
    kx_, k1, k2, k3 = jax.random.split(key, 4)
    x_nchw = jax.random.normal(kx_, (batch, in_channels, H, W), jnp.float32)
    w1 = _init_conv_weight(k1, out_channels, in_channels)   # conv1: in  -> out
    w2 = _init_conv_weight(k2, out_channels, out_channels)  # conv2: out -> out
    w3 = _init_conv_weight(k3, 1, out_channels)             # conv3: out -> 1

    fwd = jax.jit(functools.partial(siren_block_forward, omega=omega))
    out, s1, s2, s3 = fwd(x_nchw, w1, w2, w3)
    jax.block_until_ready((out, s1, s2, s3))

    # Reference in plain JAX (lax.conv).  omega=30 amplifies f32 rounding through each
    # sin() layer, so tolerances widen slightly per layer.
    r1 = _conv_ref_nchw(x_nchw, w1)
    r2 = _conv_ref_nchw(jnp.sin(omega * r1), w2)
    r3 = _conv_ref_nchw(jnp.sin(omega * r2), w3)
    assert jnp.allclose(s1, r1, rtol=1e-4, atol=1e-4), "siren_1 mismatch"
    assert jnp.allclose(s2, r2, rtol=5e-4, atol=5e-4), "siren_2 mismatch"
    assert jnp.allclose(s3, r3, rtol=1e-3, atol=1e-3), "siren_3 mismatch"
    assert out.shape == (batch, 1, H, W)
    assert jnp.array_equal(out, s3)

    print("KERNEL_OK")
</pallas_src>

<mosaic_0001>
module attributes {stable_mosaic.version = 11 : i64} {
  func.func @_siren_block_kernel(%arg0: i32, %arg1: memref<1x16x64xf32, #tpu.memory_space<vmem>>, %arg2: memref<5x80x128xf32, #tpu.memory_space<vmem>>, %arg3: memref<5x160x128xf32, #tpu.memory_space<vmem>>, %arg4: memref<5x160x16xf32, #tpu.memory_space<vmem>>, %arg5: memref<1x16x128xf32, #tpu.memory_space<vmem>>, %arg6: memref<1x16x128xf32, #tpu.memory_space<vmem>>, %arg7: memref<1x16x16xf32, #tpu.memory_space<vmem>>, %arg8: memref<1x20x80xf32, #tpu.memory_space<vmem>>, %arg9: memref<1x20x160xf32, #tpu.memory_space<vmem>>, %arg10: memref<1x20x160xf32, #tpu.memory_space<vmem>>) attributes {dimension_semantics = [#tpu.dimension_semantics<parallel>], iteration_bounds = array<i64: 2>, scalar_prefetch = 0 : i64, scratch_operands = 3 : i64, tpu.core_type = #tpu.core_type<tc>, window_params = [{transform_indices = @transform_0, window_bounds = array<i64: 1, 16, 64>}, {pipeline_mode = #tpu.pipeline_mode<synchronous>, transform_indices = @transform_1, window_bounds = array<i64: 5, 80, 128>}, {pipeline_mode = #tpu.pipeline_mode<synchronous>, transform_indices = @transform_2, window_bounds = array<i64: 5, 160, 128>}, {pipeline_mode = #tpu.pipeline_mode<synchronous>, transform_indices = @transform_3, window_bounds = array<i64: 5, 160, 16>}, {transform_indices = @transform_4, window_bounds = array<i64: 1, 16, 128>}, {transform_indices = @transform_5, window_bounds = array<i64: 1, 16, 128>}, {transform_indices = @transform_6, window_bounds = array<i64: 1, 16, 16>}]} {
    %c0 = arith.constant 0 : index
    %c0_0 = arith.constant 0 : index
    %c0_1 = arith.constant 0 : index
    %0 = vector.load %arg1[%c0, %c0_0, %c0_1] : memref<1x16x64xf32, #tpu.memory_space<vmem>>, vector<1x16x64xf32>
    %cst = arith.constant 0.000000e+00 : f32
    %1 = vector.broadcast %cst : f32 to vector<1x2x80xf32>
    %c0_2 = arith.constant 0 : index
    %c0_3 = arith.constant 0 : index
    %c0_4 = arith.constant 0 : index
    %2 = vector.load %arg8[%c0_2, %c0_3, %c0_4] : memref<1x20x80xf32, #tpu.memory_space<vmem>>, vector<1x2x80xf32>
    tpu.vector_store %arg8[%c0_2, %c0_3, %c0_4], %1 {strides = array<i32>} : memref<1x20x80xf32, #tpu.memory_space<vmem>>, vector<1x2x80xf32>,
    %cst_5 = arith.constant 0.000000e+00 : f32
    %3 = vector.broadcast %cst_5 : f32 to vector<1x2x80xf32>
    %c0_6 = arith.constant 0 : index
    %c18 = arith.constant 18 : index
    %c0_7 = arith.constant 0 : index
    %4 = vector.load %arg8[%c0_6, %c18, %c0_7] : memref<1x20x80xf32, #tpu.memory_space<vmem>>, vector<1x2x80xf32>
    tpu.vector_store %arg8[%c0_6, %c18, %c0_7], %3 {strides = array<i32>} : memref<1x20x80xf32, #tpu.memory_space<vmem>>, vector<1x2x80xf32>,
    %cst_8 = arith.constant 0.000000e+00 : f32
    %5 = vector.broadcast %cst_8 : f32 to vector<1x16x8xf32>
    %c0_9 = arith.constant 0 : index
    %c2 = arith.constant 2 : index
    %c0_10 = arith.constant 0 : index
    %6 = vector.load %arg8[%c0_9, %c2, %c0_10] : memref<1x20x80xf32, #tpu.memory_space<vmem>>, vector<1x16x8xf32>
    tpu.vector_store %arg8[%c0_9, %c2, %c0_10], %5 {strides = array<i32>} : memref<1x20x80xf32, #tpu.memory_space<vmem>>, vector<1x16x8xf32>,
    %cst_11 = arith.constant 0.000000e+00 : f32
    %7 = vector.broadcast %cst_11 : f32 to vector<1x16x8xf32>
    %c0_12 = arith.constant 0 : index
    %c2_13 = arith.constant 2 : index
    %c72 = arith.constant 72 : index
    %8 = vector.load %arg8[%c0_12, %c2_13, %c72] : memref<1x20x80xf32, #tpu.memory_space<vmem>>, vector<1x16x8xf32>
    tpu.vector_store %arg8[%c0_12, %c2_13, %c72], %7 {strides = array<i32>} : memref<1x20x80xf32, #tpu.memory_space<vmem>>, vector<1x16x8xf32>,
    %c0_14 = arith.constant 0 : index
    %c2_15 = arith.constant 2 : index
    %c8 = arith.constant 8 : index
    %9 = vector.load %arg8[%c0_14, %c2_15, %c8] : memref<1x20x80xf32, #tpu.memory_space<vmem>>, vector<1x16x64xf32>
    tpu.vector_store %arg8[%c0_14, %c2_15, %c8], %0 {strides = array<i32>} : memref<1x20x80xf32, #tpu.memory_space<vmem>>, vector<1x16x64xf32>,
    %cst_16 = arith.constant 0.000000e+00 : f32
    %10 = vector.broadcast %cst_16 : f32 to vector<16x128xf32>
    %c0_17 = arith.constant 0 : index
    %c0_18 = arith.constant 0 : index
    %c0_19 = arith.constant 0 : index
    %11 = vector.load %arg8[%c0_17, %c0_18, %c0_19] : memref<1x20x80xf32, #tpu.memory_space<vmem>>, vector<1x16x80xf32>
    %12 = vector.shape_cast %11 : vector<1x16x80xf32> to vector<16x80xf32>
    %c0_20 = arith.constant 0 : index
    %c0_21 = arith.constant 0 : index
    %c0_22 = arith.constant 0 : index
    %13 = vector.load %arg2[%c0_20, %c0_21, %c0_22] : memref<5x80x128xf32, #tpu.memory_space<vmem>>, vector<1x80x128xf32>
    %14 = vector.shape_cast %13 : vector<1x80x128xf32> to vector<80x128xf32>
    %cst_23 = arith.constant dense<0.000000e+00> : vector<16x128xf32>
    %15 = tpu.matmul %12, %14, %cst_23 {dimension_numbers = #tpu.dot_dimension_numbers<[1], [0], [0], [1], [0, 0, 1, 1], [], []>} : vector<16x80xf32>, vector<80x128xf32>, vector<16x128xf32> -> vector<16x128xf32>
    %16 = arith.addf %10, %15 : vector<16x128xf32>
    %c0_24 = arith.constant 0 : index
    %c1 = arith.constant 1 : index
    %c0_25 = arith.constant 0 : index
    %17 = vector.load %arg8[%c0_24, %c1, %c0_25] : memref<1x20x80xf32, #tpu.memory_space<vmem>>, vector<1x16x80xf32>
    %18 = vector.shape_cast %17 : vector<1x16x80xf32> to vector<16x80xf32>
    %c1_26 = arith.constant 1 : index
    %c0_27 = arith.constant 0 : index
    %c0_28 = arith.constant 0 : index
    %19 = vector.load %arg2[%c1_26, %c0_27, %c0_28] : memref<5x80x128xf32, #tpu.memory_space<vmem>>, vector<1x80x128xf32>
    %20 = vector.shape_cast %19 : vector<1x80x128xf32> to vector<80x128xf32>
    %cst_29 = arith.constant dense<0.000000e+00> : vector<16x128xf32>
    %21 = tpu.matmul %18, %20, %cst_29 {dimension_numbers = #tpu.dot_dimension_numbers<[1], [0], [0], [1], [0, 0, 1, 1], [], []>} : vector<16x80xf32>, vector<80x128xf32>, vector<16x128xf32> -> vector<16x128xf32>
    %22 = arith.addf %16, %21 : vector<16x128xf32>
    %c0_30 = arith.constant 0 : index
    %c2_31 = arith.constant 2 : index
    %c0_32 = arith.constant 0 : index
    %23 = vector.load %arg8[%c0_30, %c2_31, %c0_32] : memref<1x20x80xf32, #tpu.memory_space<vmem>>, vector<1x16x80xf32>
    %24 = vector.shape_cast %23 : vector<1x16x80xf32> to vector<16x80xf32>
    %c2_33 = arith.constant 2 : index
    %c0_34 = arith.constant 0 : index
    %c0_35 = arith.constant 0 : index
    %25 = vector.load %arg2[%c2_33, %c0_34, %c0_35] : memref<5x80x128xf32, #tpu.memory_space<vmem>>, vector<1x80x128xf32>
    %26 = vector.shape_cast %25 : vector<1x80x128xf32> to vector<80x128xf32>
    %cst_36 = arith.constant dense<0.000000e+00> : vector<16x128xf32>
    %27 = tpu.matmul %24, %26, %cst_36 {dimension_numbers = #tpu.dot_dimension_numbers<[1], [0], [0], [1], [0, 0, 1, 1], [], []>} : vector<16x80xf32>, vector<80x128xf32>, vector<16x128xf32> -> vector<16x128xf32>
    %28 = arith.addf %22, %27 : vector<16x128xf32>
    %c0_37 = arith.constant 0 : index
    %c3 = arith.constant 3 : index
    %c0_38 = arith.constant 0 : index
    %29 = vector.load %arg8[%c0_37, %c3, %c0_38] : memref<1x20x80xf32, #tpu.memory_space<vmem>>, vector<1x16x80xf32>
    %30 = vector.shape_cast %29 : vector<1x16x80xf32> to vector<16x80xf32>
    %c3_39 = arith.constant 3 : index
    %c0_40 = arith.constant 0 : index
    %c0_41 = arith.constant 0 : index
    %31 = vector.load %arg2[%c3_39, %c0_40, %c0_41] : memref<5x80x128xf32, #tpu.memory_space<vmem>>, vector<1x80x128xf32>
    %32 = vector.shape_cast %31 : vector<1x80x128xf32> to vector<80x128xf32>
    %cst_42 = arith.constant dense<0.000000e+00> : vector<16x128xf32>
    %33 = tpu.matmul %30, %32, %cst_42 {dimension_numbers = #tpu.dot_dimension_numbers<[1], [0], [0], [1], [0, 0, 1, 1], [], []>} : vector<16x80xf32>, vector<80x128xf32>, vector<16x128xf32> -> vector<16x128xf32>
    %34 = arith.addf %28, %33 : vector<16x128xf32>
    %c0_43 = arith.constant 0 : index
    %c4 = arith.constant 4 : index
    %c0_44 = arith.constant 0 : index
    %35 = vector.load %arg8[%c0_43, %c4, %c0_44] : memref<1x20x80xf32, #tpu.memory_space<vmem>>, vector<1x16x80xf32>
    %36 = vector.shape_cast %35 : vector<1x16x80xf32> to vector<16x80xf32>
    %c4_45 = arith.constant 4 : index
    %c0_46 = arith.constant 0 : index
    %c0_47 = arith.constant 0 : index
    %37 = vector.load %arg2[%c4_45, %c0_46, %c0_47] : memref<5x80x128xf32, #tpu.memory_space<vmem>>, vector<1x80x128xf32>
    %38 = vector.shape_cast %37 : vector<1x80x128xf32> to vector<80x128xf32>
    %cst_48 = arith.constant dense<0.000000e+00> : vector<16x128xf32>
    %39 = tpu.matmul %36, %38, %cst_48 {dimension_numbers = #tpu.dot_dimension_numbers<[1], [0], [0], [1], [0, 0, 1, 1], [], []>} : vector<16x80xf32>, vector<80x128xf32>, vector<16x128xf32> -> vector<16x128xf32>
    %40 = arith.addf %34, %39 : vector<16x128xf32>
    %41 = vector.shape_cast %40 : vector<16x128xf32> to vector<1x16x128xf32>
    %c0_49 = arith.constant 0 : index
    %c0_50 = arith.constant 0 : index
    %c0_51 = arith.constant 0 : index
    %42 = vector.load %arg5[%c0_49, %c0_50, %c0_51] : memref<1x16x128xf32, #tpu.memory_space<vmem>>, vector<1x16x128xf32>
    tpu.vector_store %arg5[%c0_49, %c0_50, %c0_51], %41 {strides = array<i32>} : memref<1x16x128xf32, #tpu.memory_space<vmem>>, vector<1x16x128xf32>,
    %cst_52 = arith.constant 3.000000e+01 : f32
    %43 = vector.broadcast %cst_52 : f32 to vector<1x16x128xf32>
    %44 = arith.mulf %43, %41 : vector<1x16x128xf32>
    %45 = math.sin %44 : vector<1x16x128xf32>
    %cst_53 = arith.constant 0.000000e+00 : f32
    %46 = vector.broadcast %cst_53 : f32 to vector<1x2x160xf32>
    %c0_54 = arith.constant 0 : index
    %c0_55 = arith.constant 0 : index
    %c0_56 = arith.constant 0 : index
    %47 = vector.load %arg9[%c0_54, %c0_55, %c0_56] : memref<1x20x160xf32, #tpu.memory_space<vmem>>, vector<1x2x160xf32>
    tpu.vector_store %arg9[%c0_54, %c0_55, %c0_56], %46 {strides = array<i32>} : memref<1x20x160xf32, #tpu.memory_space<vmem>>, vector<1x2x160xf32>,
    %cst_57 = arith.constant 0.000000e+00 : f32
    %48 = vector.broadcast %cst_57 : f32 to vector<1x2x160xf32>
    %c0_58 = arith.constant 0 : index
    %c18_59 = arith.constant 18 : index
    %c0_60 = arith.constant 0 : index
    %49 = vector.load %arg9[%c0_58, %c18_59, %c0_60] : memref<1x20x160xf32, #tpu.memory_space<vmem>>, vector<1x2x160xf32>
    tpu.vector_store %arg9[%c0_58, %c18_59, %c0_60], %48 {strides = array<i32>} : memref<1x20x160xf32, #tpu.memory_space<vmem>>, vector<1x2x160xf32>,
    %cst_61 = arith.constant 0.000000e+00 : f32
    %50 = vector.broadcast %cst_61 : f32 to vector<1x16x16xf32>
    %c0_62 = arith.constant 0 : index
    %c2_63 = arith.constant 2 : index
    %c0_64 = arith.constant 0 : index
    %51 = vector.load %arg9[%c0_62, %c2_63, %c0_64] : memref<1x20x160xf32, #tpu.memory_space<vmem>>, vector<1x16x16xf32>
    tpu.vector_store %arg9[%c0_62, %c2_63, %c0_64], %50 {strides = array<i32>} : memref<1x20x160xf32, #tpu.memory_space<vmem>>, vector<1x16x16xf32>,
    %cst_65 = arith.constant 0.000000e+00 : f32
    %52 = vector.broadcast %cst_65 : f32 to vector<1x16x16xf32>
    %c0_66 = arith.constant 0 : index
    %c2_67 = arith.constant 2 : index
    %c144 = arith.constant 144 : index
    %53 = vector.load %arg9[%c0_66, %c2_67, %c144] : memref<1x20x160xf32, #tpu.memory_space<vmem>>, vector<1x16x16xf32>
    tpu.vector_store %arg9[%c0_66, %c2_67, %c144], %52 {strides = array<i32>} : memref<1x20x160xf32, #tpu.memory_space<vmem>>, vector<1x16x16xf32>,
    %c0_68 = arith.constant 0 : index
    %c2_69 = arith.constant 2 : index
    %c16 = arith.constant 16 : index
    %54 = vector.load %arg9[%c0_68, %c2_69, %c16] : memref<1x20x160xf32, #tpu.memory_space<vmem>>, vector<1x16x128xf32>
    tpu.vector_store %arg9[%c0_68, %c2_69, %c16], %45 {strides = array<i32>} : memref<1x20x160xf32, #tpu.memory_space<vmem>>, vector<1x16x128xf32>,
    %cst_70 = arith.constant 0.000000e+00 : f32
    %55 = vector.broadcast %cst_70 : f32 to vector<16x128xf32>
    %c0_71 = arith.constant 0 : index
    %c0_72 = arith.constant 0 : index
    %c0_73 = arith.constant 0 : index
    %56 = vector.load %arg9[%c0_71, %c0_72, %c0_73] : memref<1x20x160xf32, #tpu.memory_space<vmem>>, vector<1x16x160xf32>
    %57 = vector.shape_cast %56 : vector<1x16x160xf32> to vector<16x160xf32>
    %c0_74 = arith.constant 0 : index
    %c0_75 = arith.constant 0 : index
    %c0_76 = arith.constant 0 : index
    %58 = vector.load %arg3[%c0_74, %c0_75, %c0_76] : memref<5x160x128xf32, #tpu.memory_space<vmem>>, vector<1x160x128xf32>
    %59 = vector.shape_cast %58 : vector<1x160x128xf32> to vector<160x128xf32>
    %cst_77 = arith.constant dense<0.000000e+00> : vector<16x128xf32>
    %60 = tpu.matmul %57, %59, %cst_77 {dimension_numbers = #tpu.dot_dimension_numbers<[1], [0], [0], [1], [0, 0, 1, 1], [], []>} : vector<16x160xf32>, vector<160x128xf32>, vector<16x128xf32> -> vector<16x128xf32>
    %61 = arith.addf %55, %60 : vector<16x128xf32>
    %c0_78 = arith.constant 0 : index
    %c1_79 = arith.constant 1 : index
    %c0_80 = arith.constant 0 : index
    %62 = vector.load %arg9[%c0_78, %c1_79, %c0_80] : memref<1x20x160xf32, #tpu.memory_space<vmem>>, vector<1x16x160xf32>
    %63 = vector.shape_cast %62 : vector<1x16x160xf32> to vector<16x160xf32>
    %c1_81 = arith.constant 1 : index
    %c0_82 = arith.constant 0 : index
    %c0_83 = arith.constant 0 : index
    %64 = vector.load %arg3[%c1_81, %c0_82, %c0_83] : memref<5x160x128xf32, #tpu.memory_space<vmem>>, vector<1x160x128xf32>
    %65 = vector.shape_cast %64 : vector<1x160x128xf32> to vector<160x128xf32>
    %cst_84 = arith.constant dense<0.000000e+00> : vector<16x128xf32>
    %66 = tpu.matmul %63, %65, %cst_84 {dimension_numbers = #tpu.dot_dimension_numbers<[1], [0], [0], [1], [0, 0, 1, 1], [], []>} : vector<16x160xf32>, vector<160x128xf32>, vector<16x128xf32> -> vector<16x128xf32>
    %67 = arith.addf %61, %66 : vector<16x128xf32>
    %c0_85 = arith.constant 0 : index
    %c2_86 = arith.constant 2 : index
    %c0_87 = arith.constant 0 : index
    %68 = vector.load %arg9[%c0_85, %c2_86, %c0_87] : memref<1x20x160xf32, #tpu.memory_space<vmem>>, vector<1x16x160xf32>
    %69 = vector.shape_cast %68 : vector<1x16x160xf32> to vector<16x160xf32>
    %c2_88 = arith.constant 2 : index
    %c0_89 = arith.constant 0 : index
    %c0_90 = arith.constant 0 : index
    %70 = vector.load %arg3[%c2_88, %c0_89, %c0_90] : memref<5x160x128xf32, #tpu.memory_space<vmem>>, vector<1x160x128xf32>
    %71 = vector.shape_cast %70 : vector<1x160x128xf32> to vector<160x128xf32>
    %cst_91 = arith.constant dense<0.000000e+00> : vector<16x128xf32>
    %72 = tpu.matmul %69, %71, %cst_91 {dimension_numbers = #tpu.dot_dimension_numbers<[1], [0], [0], [1], [0, 0, 1, 1], [], []>} : vector<16x160xf32>, vector<160x128xf32>, vector<16x128xf32> -> vector<16x128xf32>
    %73 = arith.addf %67, %72 : vector<16x128xf32>
    %c0_92 = arith.constant 0 : index
    %c3_93 = arith.constant 3 : index
    %c0_94 = arith.constant 0 : index
    %74 = vector.load %arg9[%c0_92, %c3_93, %c0_94] : memref<1x20x160xf32, #tpu.memory_space<vmem>>, vector<1x16x160xf32>
    %75 = vector.shape_cast %74 : vector<1x16x160xf32> to vector<16x160xf32>
    %c3_95 = arith.constant 3 : index
    %c0_96 = arith.constant 0 : index
    %c0_97 = arith.constant 0 : index
    %76 = vector.load %arg3[%c3_95, %c0_96, %c0_97] : memref<5x160x128xf32, #tpu.memory_space<vmem>>, vector<1x160x128xf32>
    %77 = vector.shape_cast %76 : vector<1x160x128xf32> to vector<160x128xf32>
    %cst_98 = arith.constant dense<0.000000e+00> : vector<16x128xf32>
    %78 = tpu.matmul %75, %77, %cst_98 {dimension_numbers = #tpu.dot_dimension_numbers<[1], [0], [0], [1], [0, 0, 1, 1], [], []>} : vector<16x160xf32>, vector<160x128xf32>, vector<16x128xf32> -> vector<16x128xf32>
    %79 = arith.addf %73, %78 : vector<16x128xf32>
    %c0_99 = arith.constant 0 : index
    %c4_100 = arith.constant 4 : index
    %c0_101 = arith.constant 0 : index
    %80 = vector.load %arg9[%c0_99, %c4_100, %c0_101] : memref<1x20x160xf32, #tpu.memory_space<vmem>>, vector<1x16x160xf32>
    %81 = vector.shape_cast %80 : vector<1x16x160xf32> to vector<16x160xf32>
    %c4_102 = arith.constant 4 : index
    %c0_103 = arith.constant 0 : index
    %c0_104 = arith.constant 0 : index
    %82 = vector.load %arg3[%c4_102, %c0_103, %c0_104] : memref<5x160x128xf32, #tpu.memory_space<vmem>>, vector<1x160x128xf32>
    %83 = vector.shape_cast %82 : vector<1x160x128xf32> to vector<160x128xf32>
    %cst_105 = arith.constant dense<0.000000e+00> : vector<16x128xf32>
    %84 = tpu.matmul %81, %83, %cst_105 {dimension_numbers = #tpu.dot_dimension_numbers<[1], [0], [0], [1], [0, 0, 1, 1], [], []>} : vector<16x160xf32>, vector<160x128xf32>, vector<16x128xf32> -> vector<16x128xf32>
    %85 = arith.addf %79, %84 : vector<16x128xf32>
    %86 = vector.shape_cast %85 : vector<16x128xf32> to vector<1x16x128xf32>
    %c0_106 = arith.constant 0 : index
    %c0_107 = arith.constant 0 : index
    %c0_108 = arith.constant 0 : index
    %87 = vector.load %arg6[%c0_106, %c0_107, %c0_108] : memref<1x16x128xf32, #tpu.memory_space<vmem>>, vector<1x16x128xf32>
    tpu.vector_store %arg6[%c0_106, %c0_107, %c0_108], %86 {strides = array<i32>} : memref<1x16x128xf32, #tpu.memory_space<vmem>>, vector<1x16x128xf32>,
    %cst_109 = arith.constant 3.000000e+01 : f32
    %88 = vector.broadcast %cst_109 : f32 to vector<1x16x128xf32>
    %89 = arith.mulf %88, %86 : vector<1x16x128xf32>
    %90 = math.sin %89 : vector<1x16x128xf32>
    %cst_110 = arith.constant 0.000000e+00 : f32
    %91 = vector.broadcast %cst_110 : f32 to vector<1x2x160xf32>
    %c0_111 = arith.constant 0 : index
    %c0_112 = arith.constant 0 : index
    %c0_113 = arith.constant 0 : index
    %92 = vector.load %arg10[%c0_111, %c0_112, %c0_113] : memref<1x20x160xf32, #tpu.memory_space<vmem>>, vector<1x2x160xf32>
    tpu.vector_store %arg10[%c0_111, %c0_112, %c0_113], %91 {strides = array<i32>} : memref<1x20x160xf32, #tpu.memory_space<vmem>>, vector<1x2x160xf32>,
    %cst_114 = arith.constant 0.000000e+00 : f32
    %93 = vector.broadcast %cst_114 : f32 to vector<1x2x160xf32>
    %c0_115 = arith.constant 0 : index
    %c18_116 = arith.constant 18 : index
    %c0_117 = arith.constant 0 : index
    %94 = vector.load %arg10[%c0_115, %c18_116, %c0_117] : memref<1x20x160xf32, #tpu.memory_space<vmem>>, vector<1x2x160xf32>
    tpu.vector_store %arg10[%c0_115, %c18_116, %c0_117], %93 {strides = array<i32>} : memref<1x20x160xf32, #tpu.memory_space<vmem>>, vector<1x2x160xf32>,
    %cst_118 = arith.constant 0.000000e+00 : f32
    %95 = vector.broadcast %cst_118 : f32 to vector<1x16x16xf32>
    %c0_119 = arith.constant 0 : index
    %c2_120 = arith.constant 2 : index
    %c0_121 = arith.constant 0 : index
    %96 = vector.load %arg10[%c0_119, %c2_120, %c0_121] : memref<1x20x160xf32, #tpu.memory_space<vmem>>, vector<1x16x16xf32>
    tpu.vector_store %arg10[%c0_119, %c2_120, %c0_121], %95 {strides = array<i32>} : memref<1x20x160xf32, #tpu.memory_space<vmem>>, vector<1x16x16xf32>,
    %cst_122 = arith.constant 0.000000e+00 : f32
    %97 = vector.broadcast %cst_122 : f32 to vector<1x16x16xf32>
    %c0_123 = arith.constant 0 : index
    %c2_124 = arith.constant 2 : index
    %c144_125 = arith.constant 144 : index
    %98 = vector.load %arg10[%c0_123, %c2_124, %c144_125] : memref<1x20x160xf32, #tpu.memory_space<vmem>>, vector<1x16x16xf32>
    tpu.vector_store %arg10[%c0_123, %c2_124, %c144_125], %97 {strides = array<i32>} : memref<1x20x160xf32, #tpu.memory_space<vmem>>, vector<1x16x16xf32>,
    %c0_126 = arith.constant 0 : index
    %c2_127 = arith.constant 2 : index
    %c16_128 = arith.constant 16 : index
    %99 = vector.load %arg10[%c0_126, %c2_127, %c16_128] : memref<1x20x160xf32, #tpu.memory_space<vmem>>, vector<1x16x128xf32>
    tpu.vector_store %arg10[%c0_126, %c2_127, %c16_128], %90 {strides = array<i32>} : memref<1x20x160xf32, #tpu.memory_space<vmem>>, vector<1x16x128xf32>,
    %cst_129 = arith.constant 0.000000e+00 : f32
    %100 = vector.broadcast %cst_129 : f32 to vector<16x16xf32>
    %c0_130 = arith.constant 0 : index
    %c0_131 = arith.constant 0 : index
    %c0_132 = arith.constant 0 : index
    %101 = vector.load %arg10[%c0_130, %c0_131, %c0_132] : memref<1x20x160xf32, #tpu.memory_space<vmem>>, vector<1x16x160xf32>
    %102 = vector.shape_cast %101 : vector<1x16x160xf32> to vector<16x160xf32>
    %c0_133 = arith.constant 0 : index
    %c0_134 = arith.constant 0 : index
    %c0_135 = arith.constant 0 : index
    %103 = vector.load %arg4[%c0_133, %c0_134, %c0_135] : memref<5x160x16xf32, #tpu.memory_space<vmem>>, vector<1x160x16xf32>
    %104 = vector.shape_cast %103 : vector<1x160x16xf32> to vector<160x16xf32>
    %cst_136 = arith.constant dense<0.000000e+00> : vector<16x16xf32>
    %105 = tpu.matmul %102, %104, %cst_136 {dimension_numbers = #tpu.dot_dimension_numbers<[1], [0], [0], [1], [0, 0, 1, 1], [], []>} : vector<16x160xf32>, vector<160x16xf32>, vector<16x16xf32> -> vector<16x16xf32>
    %106 = arith.addf %100, %105 : vector<16x16xf32>
    %c0_137 = arith.constant 0 : index
    %c1_138 = arith.constant 1 : index
    %c0_139 = arith.constant 0 : index
    %107 = vector.load %arg10[%c0_137, %c1_138, %c0_139] : memref<1x20x160xf32, #tpu.memory_space<vmem>>, vector<1x16x160xf32>
    %108 = vector.shape_cast %107 : vector<1x16x160xf32> to vector<16x160xf32>
    %c1_140 = arith.constant 1 : index
    %c0_141 = arith.constant 0 : index
    %c0_142 = arith.constant 0 : index
    %109 = vector.load %arg4[%c1_140, %c0_141, %c0_142] : memref<5x160x16xf32, #tpu.memory_space<vmem>>, vector<1x160x16xf32>
    %110 = vector.shape_cast %109 : vector<1x160x16xf32> to vector<160x16xf32>
    %cst_143 = arith.constant dense<0.000000e+00> : vector<16x16xf32>
    %111 = tpu.matmul %108, %110, %cst_143 {dimension_numbers = #tpu.dot_dimension_numbers<[1], [0], [0], [1], [0, 0, 1, 1], [], []>} : vector<16x160xf32>, vector<160x16xf32>, vector<16x16xf32> -> vector<16x16xf32>
    %112 = arith.addf %106, %111 : vector<16x16xf32>
    %c0_144 = arith.constant 0 : index
    %c2_145 = arith.constant 2 : index
    %c0_146 = arith.constant 0 : index
    %113 = vector.load %arg10[%c0_144, %c2_145, %c0_146] : memref<1x20x160xf32, #tpu.memory_space<vmem>>, vector<1x16x160xf32>
    %114 = vector.shape_cast %113 : vector<1x16x160xf32> to vector<16x160xf32>
    %c2_147 = arith.constant 2 : index
    %c0_148 = arith.constant 0 : index
    %c0_149 = arith.constant 0 : index
    %115 = vector.load %arg4[%c2_147, %c0_148, %c0_149] : memref<5x160x16xf32, #tpu.memory_space<vmem>>, vector<1x160x16xf32>
    %116 = vector.shape_cast %115 : vector<1x160x16xf32> to vector<160x16xf32>
    %cst_150 = arith.constant dense<0.000000e+00> : vector<16x16xf32>
    %117 = tpu.matmul %114, %116, %cst_150 {dimension_numbers = #tpu.dot_dimension_numbers<[1], [0], [0], [1], [0, 0, 1, 1], [], []>} : vector<16x160xf32>, vector<160x16xf32>, vector<16x16xf32> -> vector<16x16xf32>
    %118 = arith.addf %112, %117 : vector<16x16xf32>
    %c0_151 = arith.constant 0 : index
    %c3_152 = arith.constant 3 : index
    %c0_153 = arith.constant 0 : index
    %119 = vector.load %arg10[%c0_151, %c3_152, %c0_153] : memref<1x20x160xf32, #tpu.memory_space<vmem>>, vector<1x16x160xf32>
    %120 = vector.shape_cast %119 : vector<1x16x160xf32> to vector<16x160xf32>
    %c3_154 = arith.constant 3 : index
    %c0_155 = arith.constant 0 : index
    %c0_156 = arith.constant 0 : index
    %121 = vector.load %arg4[%c3_154, %c0_155, %c0_156] : memref<5x160x16xf32, #tpu.memory_space<vmem>>, vector<1x160x16xf32>
    %122 = vector.shape_cast %121 : vector<1x160x16xf32> to vector<160x16xf32>
    %cst_157 = arith.constant dense<0.000000e+00> : vector<16x16xf32>
    %123 = tpu.matmul %120, %122, %cst_157 {dimension_numbers = #tpu.dot_dimension_numbers<[1], [0], [0], [1], [0, 0, 1, 1], [], []>} : vector<16x160xf32>, vector<160x16xf32>, vector<16x16xf32> -> vector<16x16xf32>
    %124 = arith.addf %118, %123 : vector<16x16xf32>
    %c0_158 = arith.constant 0 : index
    %c4_159 = arith.constant 4 : index
    %c0_160 = arith.constant 0 : index
    %125 = vector.load %arg10[%c0_158, %c4_159, %c0_160] : memref<1x20x160xf32, #tpu.memory_space<vmem>>, vector<1x16x160xf32>
    %126 = vector.shape_cast %125 : vector<1x16x160xf32> to vector<16x160xf32>
    %c4_161 = arith.constant 4 : index
    %c0_162 = arith.constant 0 : index
    %c0_163 = arith.constant 0 : index
    %127 = vector.load %arg4[%c4_161, %c0_162, %c0_163] : memref<5x160x16xf32, #tpu.memory_space<vmem>>, vector<1x160x16xf32>
    %128 = vector.shape_cast %127 : vector<1x160x16xf32> to vector<160x16xf32>
    %cst_164 = arith.constant dense<0.000000e+00> : vector<16x16xf32>
    %129 = tpu.matmul %126, %128, %cst_164 {dimension_numbers = #tpu.dot_dimension_numbers<[1], [0], [0], [1], [0, 0, 1, 1], [], []>} : vector<16x160xf32>, vector<160x16xf32>, vector<16x16xf32> -> vector<16x16xf32>
    %130 = arith.addf %124, %129 : vector<16x16xf32>
    %131 = vector.shape_cast %130 : vector<16x16xf32> to vector<1x16x16xf32>
    %c0_165 = arith.constant 0 : index
    %c0_166 = arith.constant 0 : index
    %c0_167 = arith.constant 0 : index
    %132 = vector.load %arg7[%c0_165, %c0_166, %c0_167] : memref<1x16x16xf32, #tpu.memory_space<vmem>>, vector<1x16x16xf32>
    tpu.vector_store %arg7[%c0_165, %c0_166, %c0_167], %131 {strides = array<i32>} : memref<1x16x16xf32, #tpu.memory_space<vmem>>, vector<1x16x16xf32>,
    return
  }
  func.func @transform_0(%arg0: i32) -> (i32, i32, i32) {
    %c0_i32 = arith.constant 0 : i32
    %c0_i32_0 = arith.constant 0 : i32
    %c0_i32_1 = arith.constant 0 : i32
    return %arg0, %c0_i32, %c0_i32_0 : i32, i32, i32
  }
  func.func @transform_1(%arg0: i32) -> (i32, i32, i32) {
    %c0_i32 = arith.constant 0 : i32
    %c0_i32_0 = arith.constant 0 : i32
    %c0_i32_1 = arith.constant 0 : i32
    %c0_i32_2 = arith.constant 0 : i32
    return %c0_i32, %c0_i32_0, %c0_i32_1 : i32, i32, i32
  }
  func.func @transform_2(%arg0: i32) -> (i32, i32, i32) {
    %c0_i32 = arith.constant 0 : i32
    %c0_i32_0 = arith.constant 0 : i32
    %c0_i32_1 = arith.constant 0 : i32
    %c0_i32_2 = arith.constant 0 : i32
    return %c0_i32, %c0_i32_0, %c0_i32_1 : i32, i32, i32
  }
  func.func @transform_3(%arg0: i32) -> (i32, i32, i32) {
    %c0_i32 = arith.constant 0 : i32
    %c0_i32_0 = arith.constant 0 : i32
    %c0_i32_1 = arith.constant 0 : i32
    %c0_i32_2 = arith.constant 0 : i32
    return %c0_i32, %c0_i32_0, %c0_i32_1 : i32, i32, i32
  }
  func.func @transform_4(%arg0: i32) -> (i32, i32, i32) {
    %c0_i32 = arith.constant 0 : i32
    %c0_i32_0 = arith.constant 0 : i32
    %c0_i32_1 = arith.constant 0 : i32
    return %arg0, %c0_i32, %c0_i32_0 : i32, i32, i32
  }
  func.func @transform_5(%arg0: i32) -> (i32, i32, i32) {
    %c0_i32 = arith.constant 0 : i32
    %c0_i32_0 = arith.constant 0 : i32
    %c0_i32_1 = arith.constant 0 : i32
    return %arg0, %c0_i32, %c0_i32_0 : i32, i32, i32
  }
  func.func @transform_6(%arg0: i32) -> (i32, i32, i32) {
    %c0_i32 = arith.constant 0 : i32
    %c0_i32_0 = arith.constant 0 : i32
    %c0_i32_1 = arith.constant 0 : i32
    return %arg0, %c0_i32, %c0_i32_0 : i32, i32, i32
  }
}

</mosaic_0001>

<llo_original>
// kernel: siren_block_forward.1
$region0: #{siren_block_forward.1}
  #allocation0 [shape = 'u32[]', space=smem, size = 0x4, offset = 0x4, fixed_abs, tag = 'smem constant byte address 0x4 - core index']
  #allocation1 [shape = 'u32[144,128]{1,0:T(1,128)}', space=vmem, size = 0x12000, scoped, tag = 'internal scratch']
  #allocation2 [shape = 'f32[1,20,80]{2,1,0:T(8,128)}', space=vmem, size = 0x3000, scoped, tag = 'scratch operand']
  #allocation3 [shape = 'f32[1,20,160]{2,1,0:T(8,128)}', space=vmem, size = 0x6000, scoped, tag = 'scratch operand']
  #allocation4 [shape = 'f32[1,20,160]{2,1,0:T(8,128)}', space=vmem, size = 0x6000, scoped, tag = 'scratch operand']
  %s0 = inlined_call_operand.vmem [shape: f32[2,16,64], index: 0, kind: input, shape index: {}]
  %s1 = inlined_call_operand.vmem [shape: f32[5,80,128], index: 1, kind: input, shape index: {}]
  %s2 = inlined_call_operand.vmem [shape: f32[5,160,128], index: 2, kind: input, shape index: {}]
  %s3 = inlined_call_operand.vmem [shape: f32[5,160,16], index: 3, kind: input, shape index: {}]
  %s4 = inlined_call_operand.vmem [shape: f32[2,16,128], index: 4, kind: output, shape index: {0}]
  %s5 = inlined_call_operand.vmem [shape: f32[2,16,128], index: 5, kind: output, shape index: {1}]
  %s6 = inlined_call_operand.vmem [shape: f32[2,16,16], index: 6, kind: output, shape index: {2}]
  %7 = xla_tuple %s4, %s5, %s6
  %s8 = sld [smem:[#allocation0]]
  $region65: #{siren_block_forward.1} parent=0
    _
  %s10 = ssub.s32 1, %s8
  %s11 = scalar_select 0, %s10, %s8
  loop: start=0, step=1, limit=4
  $region2: #{siren_block_forward.1} parent=0 // loop_pre_header
    _
  $region3: #{siren_block_forward.1} parent=0 // loop_header
    %s13 = sphi 0, %s17
    %p14 = scmp.ge.s32.totalorder %s13, 4
    %s23 = sphi 0, %s25
    %s26 = sphi 0, %s23
    %s27 = sphi 0, %s26
    %s43 = sphi 0, %s27
    %s47 = sphi 0, %s47
    %s49 = sphi 0, %s47
    %s50 = sphi 0, %s49
    %s64 = sphi 0, %s50
    %s68 = sphi 0, %s68
    %s70 = sphi 0, %s68
    %s71 = sphi 0, %s70
    %s85 = sphi 0, %s71
    %s89 = sphi 0, %s89
    %s91 = sphi 0, %s89
    %s92 = sphi 0, %s91
    %s106 = sphi 0, %s92
    %s112 = sphi 0, %s114
    %s115 = sphi 0, %s112
    %s116 = sphi 0, %s115
    %s132 = sphi 0, %s116
    %s138 = sphi 0, %s140
    %s141 = sphi 0, %s138
    %s142 = sphi 0, %s141
    %s158 = sphi 0, %s142
    %s164 = sphi 0, %s166
    %s167 = sphi 0, %s164
    %s168 = sphi 0, %s167
    %s184 = sphi 0, %s168
  $region4: #{siren_block_forward.1} parent=0 // loop_header_branch
    %16 = sbr.rel (%p14) target = $region8
  $region5: #{siren_block_forward.1} parent=0 // loop_body
    %s18 = ssub.s32 %s13, 1
    %s19 = ssub.s32 %s13, 2
    %s20 = sadd.s32 %s13, 1
    %s21 = ssub.s32 %s13, %s20
    %p22 = scmp.eq.s32.totalorder %s21, 0
    %s24 = sadd.s32 %s23, 1
    %s25 = scalar_select %p22, %s23, %s24
    %p28 = pneg %p22
    %p29 = scmp.eq.s32.totalorder %s13, 1
    %p30 = por %p28, %p29
    %p31 = scmp.ne.s32.totalorder %s23, %s26
    %p32 = scmp.eq.s32.totalorder %s13, 0
    %p33 = por %p31, %p32
    %p34 = scmp.ne.s32.totalorder %s23, %s26
    %p35 = scmp.eq.s32.totalorder %s18, 1
    %p36 = por %p34, %p35
    %p37 = scmp.ne.s32.totalorder %s26, %s27
    %p38 = scmp.eq.s32.totalorder %s18, 0
    %p39 = por %p37, %p38
    %p40 = scmp.ne.s32.totalorder %s26, %s27
    %p41 = scmp.eq.s32.totalorder %s19, 1
    %p42 = por %p40, %p41
    %p44 = scmp.ne.s32.totalorder %s27, %s43
    %p45 = scmp.eq.s32.totalorder %s19, 0
    %p46 = por %p44, %p45
    %s48 = sadd.s32 %s47, 1
    %p51 = scmp.eq.s32.totalorder %s13, 1
    %p52 = scmp.ne.s32.totalorder %s47, %s49
    %p53 = scmp.eq.s32.totalorder %s13, 0
    %p54 = por %p52, %p53
    %p55 = scmp.ne.s32.totalorder %s47, %s49
    %p56 = scmp.eq.s32.totalorder %s18, 1
    %p57 = por %p55, %p56
    %p58 = scmp.ne.s32.totalorder %s49, %s50
    %p59 = scmp.eq.s32.totalorder %s18, 0
    %p60 = por %p58, %p59
    %p61 = scmp.ne.s32.totalorder %s49, %s50
    %p62 = scmp.eq.s32.totalorder %s19, 1
    %p63 = por %p61, %p62
    %p65 = scmp.ne.s32.totalorder %s50, %s64
    %p66 = scmp.eq.s32.totalorder %s19, 0
    %p67 = por %p65, %p66
    %s69 = sadd.s32 %s68, 1
    %p72 = scmp.eq.s32.totalorder %s13, 1
    %p73 = scmp.ne.s32.totalorder %s68, %s70
    %p74 = scmp.eq.s32.totalorder %s13, 0
    %p75 = por %p73, %p74
    %p76 = scmp.ne.s32.totalorder %s68, %s70
    %p77 = scmp.eq.s32.totalorder %s18, 1
    %p78 = por %p76, %p77
    %p79 = scmp.ne.s32.totalorder %s70, %s71
    %p80 = scmp.eq.s32.totalorder %s18, 0
    %p81 = por %p79, %p80
    %p82 = scmp.ne.s32.totalorder %s70, %s71
    %p83 = scmp.eq.s32.totalorder %s19, 1
    %p84 = por %p82, %p83
    %p86 = scmp.ne.s32.totalorder %s71, %s85
    %p87 = scmp.eq.s32.totalorder %s19, 0
    %p88 = por %p86, %p87
    %s90 = sadd.s32 %s89, 1
    %p93 = scmp.eq.s32.totalorder %s13, 1
    %p94 = scmp.ne.s32.totalorder %s89, %s91
    %p95 = scmp.eq.s32.totalorder %s13, 0
    %p96 = por %p94, %p95
    %p97 = scmp.ne.s32.totalorder %s89, %s91
    %p98 = scmp.eq.s32.totalorder %s18, 1
    %p99 = por %p97, %p98
    %p100 = scmp.ne.s32.totalorder %s91, %s92
    %p101 = scmp.eq.s32.totalorder %s18, 0
    %p102 = por %p100, %p101
    %p103 = scmp.ne.s32.totalorder %s91, %s92
    %p104 = scmp.eq.s32.totalorder %s19, 1
    %p105 = por %p103, %p104
    %p107 = scmp.ne.s32.totalorder %s92, %s106
    %p108 = scmp.eq.s32.totalorder %s19, 0
    %p109 = por %p107, %p108
    %s110 = ssub.s32 %s13, %s20
    %p111 = scmp.eq.s32.totalorder %s110, 0
    %s113 = sadd.s32 %s112, 1
    %s114 = scalar_select %p111, %s112, %s113
    %p117 = pneg %p111
    %p118 = scmp.eq.s32.totalorder %s13, 1
    %p119 = por %p117, %p118
    %p120 = scmp.ne.s32.totalorder %s112, %s115
    %p121 = scmp.eq.s32.totalorder %s13, 0
    %p122 = por %p120, %p121
    %p123 = scmp.ne.s32.totalorder %s112, %s115
    %p124 = scmp.eq.s32.totalorder %s18, 1
    %p125 = por %p123, %p124
    %p126 = scmp.ne.s32.totalorder %s115, %s116
    %p127 = scmp.eq.s32.totalorder %s18, 0
    %p128 = por %p126, %p127
    %p129 = scmp.ne.s32.totalorder %s115, %s116
    %p130 = scmp.eq.s32.totalorder %s19, 1
    %p131 = por %p129, %p130
    %p133 = scmp.ne.s32.totalorder %s116, %s132
    %p134 = scmp.eq.s32.totalorder %s19, 0
    %p135 = por %p133, %p134
    %s136 = ssub.s32 %s13, %s20
    %p137 = scmp.eq.s32.totalorder %s136, 0
    %s139 = sadd.s32 %s138, 1
    %s140 = scalar_select %p137, %s138, %s139
    %p143 = pneg %p137
    %p144 = scmp.eq.s32.totalorder %s13, 1
    %p145 = por %p143, %p144
    %p146 = scmp.ne.s32.totalorder %s138, %s141
    %p147 = scmp.eq.s32.totalorder %s13, 0
    %p148 = por %p146, %p147
    %p149 = scmp.ne.s32.totalorder %s138, %s141
    %p150 = scmp.eq.s32.totalorder %s18, 1
    %p151 = por %p149, %p150
    %p152 = scmp.ne.s32.totalorder %s141, %s142
    %p153 = scmp.eq.s32.totalorder %s18, 0
    %p154 = por %p152, %p153
    %p155 = scmp.ne.s32.totalorder %s141, %s142
    %p156 = scmp.eq.s32.totalorder %s19, 1
    %p157 = por %p155, %p156
    %p159 = scmp.ne.s32.totalorder %s142, %s158
    %p160 = scmp.eq.s32.totalorder %s19, 0
    %p161 = por %p159, %p160
    %s162 = ssub.s32 %s13, %s20
    %p163 = scmp.eq.s32.totalorder %s162, 0
    %s165 = sadd.s32 %s164, 1
    %s166 = scalar_select %p163, %s164, %s165
    %p169 = pneg %p163
    %p170 = scmp.eq.s32.totalorder %s13, 1
    %p171 = por %p169, %p170
    %p172 = scmp.ne.s32.totalorder %s164, %s167
    %p173 = scmp.eq.s32.totalorder %s13, 0
    %p174 = por %p172, %p173
    %p175 = scmp.ne.s32.totalorder %s164, %s167
    %p176 = scmp.eq.s32.totalorder %s18, 1
    %p177 = por %p175, %p176
    %p178 = scmp.ne.s32.totalorder %s167, %s168
    %p179 = scmp.eq.s32.totalorder %s18, 0
    %p180 = por %p178, %p179
    %p181 = scmp.ne.s32.totalorder %s167, %s168
    %p182 = scmp.eq.s32.totalorder %s19, 1
    %p183 = por %p181, %p182
    %p185 = scmp.ne.s32.totalorder %s168, %s184
    %p186 = scmp.eq.s32.totalorder %s19, 0
    %p187 = por %p185, %p186
    %p188 = scmp.le.s32.totalorder 1, %s13
    %p189 = scmp.lt.s32.totalorder %s13, 3
    %p190 = pnand %p188, %p189
    %p191 = pneg %p190
    // Predicated region
    $region9: #{siren_block_forward.1} parent=5 // pred_check
      _
    $region10: #{siren_block_forward.1} parent=5 // pred_check_branch
      %193 = sbr.rel (%p190) target = $region12
    $region11: #{siren_block_forward.1} parent=5 // pred_region
      %s194 = ssub.s32 %s13, 1
      // Predicated region
      $region13: #{siren_block_forward.1} parent=11 // pred_check
        %p195 = pneg %p60
      $region14: #{siren_block_forward.1} parent=11 // pred_check_branch
        %197 = sbr.rel (%p195) target = $region16
      $region15: #{siren_block_forward.1} parent=11 // pred_region
        _
      $region16: #{siren_block_forward.1} parent=11 // pred_fallthru
        _
      // Predicated region
      $region17: #{siren_block_forward.1} parent=11 // pred_check
        %p198 = pneg %p81
      $region18: #{siren_block_forward.1} parent=11 // pred_check_branch
        %200 = sbr.rel (%p198) target = $region20
      $region19: #{siren_block_forward.1} parent=11 // pred_region
        _
      $region20: #{siren_block_forward.1} parent=11 // pred_fallthru
        _
      // Predicated region
      $region21: #{siren_block_forward.1} parent=11 // pred_check
        %p201 = pneg %p102
      $region22: #{siren_block_forward.1} parent=11 // pred_check_branch
        %203 = sbr.rel (%p201) target = $region24
      $region23: #{siren_block_forward.1} parent=11 // pred_region
        _
      $region24: #{siren_block_forward.1} parent=11 // pred_fallthru
        _
    $region12: #{siren_block_forward.1} parent=5 // pred_fallthru
      _
    %p204 = scmp.lt.s32.totalorder %s13, 2
    // Predicated region
    $region25: #{siren_block_forward.1} parent=5 // pred_check
      %p205 = pneg %p204
    $region26: #{siren_block_forward.1} parent=5 // pred_check_branch
      %207 = sbr.rel (%p205) target = $region28
    $region27: #{siren_block_forward.1} parent=5 // pred_region
      // Predicated region
      $region29: #{siren_block_forward.1} parent=27 // pred_check
        %p208 = pneg %p33
      $region30: #{siren_block_forward.1} parent=27 // pred_check_branch
        %210 = sbr.rel (%p208) target = $region32
      $region31: #{siren_block_forward.1} parent=27 // pred_region
        %p211 = scmp.lt.s32.totalorder %s13, 1
        %s212 = scalar_select %p211, %s13, 1
        %s213 = smul.addr %s212, 2
        %s214 = smul.addr %s213, 8
        %s215 = scalar_lea.vmem %s0, %s214
      $region32: #{siren_block_forward.1} parent=27 // pred_fallthru
        _
    $region28: #{siren_block_forward.1} parent=5 // pred_fallthru
      _
    %p216 = scmp.le.s32.totalorder 1, %s13
    %p217 = scmp.lt.s32.totalorder %s13, 3
    %p218 = pnand %p216, %p217
    %p219 = pneg %p218
    // Predicated region
    $region33: #{siren_block_forward.1} parent=5 // pred_check
      _
    $region34: #{siren_block_forward.1} parent=5 // pred_check_branch
      %221 = sbr.rel (%p218) target = $region36
    $region35: #{siren_block_forward.1} parent=5 // pred_region
      %s222 = ssub.s32 %s13, 1
      %p223 = scmp.lt.s32.totalorder %s18, 1
      %s224 = scalar_select %p223, %s18, 1
      %s225 = smul.addr %s224, 2
      %s226 = smul.addr %s225, 8
      %s227 = scalar_lea.vmem %s0, %s226
      %p228 = pneg %p39
      %p229 = pneg %p36
      %p230 = pneg %p60
      %p231 = pneg %p57
      %p232 = pneg %p81
      %p233 = pneg %p78
      %p234 = pneg %p102
      %p235 = pneg %p99
      %p236 = pneg %p128
      %p237 = pneg %p125
      %p238 = scmp.lt.s32.totalorder %s18, 1
      %s239 = scalar_select %p238, %s18, 1
      %s240 = smul.addr %s239, 2
      %s241 = smul.addr %s240, 8
      %s242 = scalar_lea.vmem %s4, %s241
      %p243 = pneg %p154
      %p244 = pneg %p151
      %p245 = scmp.lt.s32.totalorder %s18, 1
      %s246 = scalar_select %p245, %s18, 1
      %s247 = smul.addr %s246, 2
      %s248 = smul.addr %s247, 8
      %s249 = scalar_lea.vmem %s5, %s248
      %p250 = pneg %p180
      %p251 = pneg %p177
      %p252 = scmp.lt.s32.totalorder %s18, 1
      %s253 = scalar_select %p252, %s18, 1
      %s254 = smul.addr %s253, 2
      %s255 = smul.addr %s254, 8
      %s256 = scalar_lea.vmem %s6, %s255
      %p257 = scmp.lt.s32.totalorder %s18, 1
      %s258 = scalar_select %p257, %s18, 1
      %s259 = smul.addr %s258, 2
      %s260 = smul.addr %s259, 8
      %s261 = scalar_lea.vmem %s0, %s260
      %p262 = scmp.lt.s32.totalorder %s18, 1
      %s263 = scalar_select %p262, %s18, 1
      %s264 = smul.addr %s263, 2
      %s265 = smul.addr %s264, 8
      %s266 = scalar_lea.vmem %s4, %s265
      %p267 = scmp.lt.s32.totalorder %s18, 1
      %s268 = scalar_select %p267, %s18, 1
      %s269 = smul.addr %s268, 2
      %s270 = smul.addr %s269, 8
      %s271 = scalar_lea.vmem %s5, %s270
      %p272 = scmp.lt.s32.totalorder %s18, 1
      %s273 = scalar_select %p272, %s18, 1
      %s274 = smul.addr %s273, 2
      %s275 = smul.addr %s274, 8
      %s276 = scalar_lea.vmem %s6, %s275
      %v277 = vld [vmem:[%s261] sm:$0xff]
      %v278 = vld [vmem:[%s261 + $0x8] sm:$0xff]
      %vm279 = vcmask 648192
      %280 = vst.msk [vmem:[#allocation2] sm:$0x3] %vm279, 0.0
      %281 = vst.msk [vmem:[#allocation2 + $0x12] sm:$0x3] %vm279, 0.0
      %vm282 = vcmask 64512
      %283 = vst.msk [vmem:[#allocation2 + $0x2] sm:$0xff] %vm282, 0.0
      %284 = vst.msk [vmem:[#allocation2 + $0xa] sm:$0xff] %vm282, 0.0
      %vm285 = vcmask 654912
      %286 = vst.msk [vmem:[#allocation2 + $0x2] sm:$0xff] %vm285, 0.0
      %287 = vst.msk [vmem:[#allocation2 + $0xa] sm:$0xff] %vm285, 0.0
      %290 = vrot.lane.b32.xlu0 %v277, 8
      %v291 = vpop.permute.xlu0 %290
      %292 = vrot.lane.b32.xlu0 %v278, 8
      %v293 = vpop.permute.xlu0 %292
      %vm296 = vcmask 588864
      %297 = vst.msk [vmem:[#allocation2 + $0x2] sm:$0xff] %vm296, %v291
      %298 = vst.msk [vmem:[#allocation2 + $0xa] sm:$0xff] %vm296, %v293
      %v299 = vld [vmem:[#allocation2] sm:$0xff]
      %v300 = vld [vmem:[#allocation2 + $0x8] sm:$0xff]
      %v301 = vld [vmem:[%s1] sm:$0xff]
      %v302 = vld [vmem:[%s1 + $0x8] sm:$0xff]
      %v303 = vld [vmem:[%s1 + $0x10] sm:$0xff]
      %v304 = vld [vmem:[%s1 + $0x18] sm:$0xff]
      %v305 = vld [vmem:[%s1 + $0x20] sm:$0xff]
      %v306 = vld [vmem:[%s1 + $0x28] sm:$0xff]
      %v307 = vld [vmem:[%s1 + $0x30] sm:$0xff]
      %v308 = vld [vmem:[%s1 + $0x38] sm:$0xff]
      %v309 = vld [vmem:[%s1 + $0x40] sm:$0xff]
      %v310 = vld [vmem:[%s1 + $0x48] sm:$0xff]
      %v311 = vld [vmem:[#allocation2 + $0x1] sm:$0xff]
      %v312 = vld [vmem:[#allocation2 + $0x9] sm:$0xff]
      %s313 = scalar_lea.vmem %s1, 80
      %v314 = vld [vmem:[%s313] sm:$0xff]
      %v315 = vld [vmem:[%s313 + $0x8] sm:$0xff]
      %v316 = vld [vmem:[%s313 + $0x10] sm:$0xff]
      %v317 = vld [vmem:[%s313 + $0x18] sm:$0xff]
      %v318 = vld [vmem:[%s313 + $0x20] sm:$0xff]
      %v319 = vld [vmem:[%s313 + $0x28] sm:$0xff]
      %v320 = vld [vmem:[%s313 + $0x30] sm:$0xff]
      %v321 = vld [vmem:[%s313 + $0x38] sm:$0xff]
      %v322 = vld [vmem:[%s313 + $0x40] sm:$0xff]
      %v323 = vld [vmem:[%s313 + $0x48] sm:$0xff]
      %vm324 = vcmask 654336
      %v326 = vsel %vm324, %v311, 0
      %v329 = vsel %vm324, %v312, 0
      %331 = vmatprep.subr.mxu0 0.0
      %332 = vmatpush1.msra.mxu0 %v314
      %333 = vmatprep.subr.mxu0 0.0
      %334 = vmatpush1.msra.mxu0 %v315
      %335 = vmatprep.subr.mxu0 0.0
      %336 = vmatpush1.msra.mxu0 %v316
      %337 = vmatprep.subr.mxu0 0.0
      %338 = vmatpush1.msra.mxu0 %v317
      %339 = vmatprep.subr.mxu0 0.0
      %340 = vmatpush1.msra.mxu0 %v318
      %341 = vmatprep.subr.mxu0 0.0
      %342 = vmatpush1.msra.mxu0 %v319
      %343 = vmatprep.subr.mxu0 0.0
      %344 = vmatpush1.msra.mxu0 %v320
      %345 = vmatprep.subr.mxu0 0.0
      %346 = vmatpush1.msra.mxu0 %v321
      %347 = vmatprep.subr.mxu0 0.0
      %348 = vmatpush1.msra.mxu0 %v322
      %349 = vmatprep.subr.mxu0 0.0
      %350 = vmatpush1.msra.mxu0 %v323
      %351 = vmatprep.subr.mxu0 0.0
      %352 = vmatpush1.msra.mxu0 0.0
      %353 = vmatprep.subr.mxu0 0.0
      %354 = vmatpush1.msra.mxu0 0.0
      %355 = vmatprep.subr.mxu0 0.0
      %356 = vmatpush1.msra.mxu0 0.0
      %357 = vmatprep.subr.mxu0 0.0
      %358 = vmatpush1.msra.mxu0 0.0
      %359 = vmatprep.subr.mxu0 0.0
      %360 = vmatpush1.msra.mxu0 0.0
      %361 = vmatprep.subr.mxu0 0.0
      %362 = vmatpush1.msra.mxu0 0.0
      %363 = vmatprep.subr.mxu0 0.0
      %364 = vmatpush1.msra.mxu0 0.0
      %365 = vmatprep.subr.mxu0 0.0
      %366 = vmatpush1.msra.mxu0 0.0
      %367 = vmatprep.subr.mxu0 0.0
      %368 = vmatpush1.msra.mxu0 0.0
      %369 = vmatprep.subr.mxu0 0.0
      %370 = vmatpush1.msra.mxu0 0.0
      %371 = vmatprep.subr.mxu0 0.0
      %372 = vmatpush1.msra.mxu0 0.0
      %373 = vmatprep.subr.mxu0 0.0
      %374 = vmatpush1.msra.mxu0 0.0
      %375 = vmatprep.subr.mxu0 0.0
      %376 = vmatpush1.msra.mxu0 0.0
      %377 = vmatprep.subr.mxu0 0.0
      %378 = vmatpush1.msra.mxu0 0.0
      %379 = vmatprep.subr.mxu0 0.0
      %380 = vmatpush1.msra.mxu0 0.0
      %381 = vmatprep.subr.mxu0 0.0
      %382 = vmatpush1.msra.mxu0 0.0
      %383 = vmatprep.subr.mxu0 0.0
      %384 = vmatpush1.msra.mxu0 0.0
      %385 = vmatprep.subr.mxu0 0.0
      %386 = vmatpush1.msra.mxu0 0.0
      %387 = vmatprep.subr.mxu0 0.0
      %388 = vmatpush1.msra.mxu0 0.0
      %389 = vmatprep.subr.mxu0 0.0
      %390 = vmatpush1.msra.mxu0 0.0
      %391 = vmatprep.subr.mxu0 0.0
      %392 = vmatpush1.msra.mxu0 0.0
      %393 = vmatprep.subr.mxu0 0.0
      %394 = vmatpush1.msra.mxu0 0.0
      %395 = vmatprep.mubr.f32.mxu0 0.0
      %396 = vmatmul.mubr.f32.gmra.mrb[0].mxu0 %v326
      %v397 = vpop.f32.mrb[0].mxu0
      %v398 = vadd.f32 0.0, %v397
      %v399 = vpop.f32.mrb[0].mxu0
      %400 = vmatprep.mubr.f32.mxu0 0.0
      %401 = vmatmul.mubr.f32.gmra.mrb[0].mxu0 %v329
      %v402 = vpop.f32.mrb[0].mxu0
      %v403 = vadd.f32 0.0, %v402
      %v404 = vpop.f32.mrb[0].mxu0
      %405 = vdwg.mxu0
      %v407 = vsel %vm324, %v299, 0
      %v410 = vsel %vm324, %v300, 0
      %412 = vmatprep.subr.mxu0 0.0
      %413 = vmatpush1.msra.mxu0 %v301
      %414 = vmatprep.subr.mxu0 0.0
      %415 = vmatpush1.msra.mxu0 %v302
      %416 = vmatprep.subr.mxu0 0.0
      %417 = vmatpush1.msra.mxu0 %v303
      %418 = vmatprep.subr.mxu0 0.0
      %419 = vmatpush1.msra.mxu0 %v304
      %420 = vmatprep.subr.mxu0 0.0
      %421 = vmatpush1.msra.mxu0 %v305
      %422 = vmatprep.subr.mxu0 0.0
      %423 = vmatpush1.msra.mxu0 %v306
      %424 = vmatprep.subr.mxu0 0.0
      %425 = vmatpush1.msra.mxu0 %v307
      %426 = vmatprep.subr.mxu0 0.0
      %427 = vmatpush1.msra.mxu0 %v308
      %428 = vmatprep.subr.mxu0 0.0
      %429 = vmatpush1.msra.mxu0 %v309
      %430 = vmatprep.subr.mxu0 0.0
      %431 = vmatpush1.msra.mxu0 %v310
      %432 = vmatprep.subr.mxu0 0.0
      %433 = vmatpush1.msra.mxu0 0.0
      %434 = vmatprep.subr.mxu0 0.0
      %435 = vmatpush1.msra.mxu0 0.0
      %436 = vmatprep.subr.mxu0 0.0
      %437 = vmatpush1.msra.mxu0 0.0
      %438 = vmatprep.subr.mxu0 0.0
      %439 = vmatpush1.msra.mxu0 0.0
      %440 = vmatprep.subr.mxu0 0.0
      %441 = vmatpush1.msra.mxu0 0.0
      %442 = vmatprep.subr.mxu0 0.0
      %443 = vmatpush1.msra.mxu0 0.0
      %444 = vmatprep.subr.mxu0 0.0
      %445 = vmatpush1.msra.mxu0 0.0
      %446 = vmatprep.subr.mxu0 0.0
      %447 = vmatpush1.msra.mxu0 0.0
      %448 = vmatprep.subr.mxu0 0.0
      %449 = vmatpush1.msra.mxu0 0.0
      %450 = vmatprep.subr.mxu0 0.0
      %451 = vmatpush1.msra.mxu0 0.0
      %452 = vmatprep.subr.mxu0 0.0
      %453 = vmatpush1.msra.mxu0 0.0
      %454 = vmatprep.subr.mxu0 0.0
      %455 = vmatpush1.msra.mxu0 0.0
      %456 = vmatprep.subr.mxu0 0.0
      %457 = vmatpush1.msra.mxu0 0.0
      %458 = vmatprep.subr.mxu0 0.0
      %459 = vmatpush1.msra.mxu0 0.0
      %460 = vmatprep.subr.mxu0 0.0
      %461 = vmatpush1.msra.mxu0 0.0
      %462 = vmatprep.subr.mxu0 0.0
      %463 = vmatpush1.msra.mxu0 0.0
      %464 = vmatprep.subr.mxu0 0.0
      %465 = vmatpush1.msra.mxu0 0.0
      %466 = vmatprep.subr.mxu0 0.0
      %467 = vmatpush1.msra.mxu0 0.0
      %468 = vmatprep.subr.mxu0 0.0
      %469 = vmatpush1.msra.mxu0 0.0
      %470 = vmatprep.subr.mxu0 0.0
      %471 = vmatpush1.msra.mxu0 0.0
      %472 = vmatprep.subr.mxu0 0.0
      %473 = vmatpush1.msra.mxu0 0.0
      %474 = vmatprep.subr.mxu0 0.0
      %475 = vmatpush1.msra.mxu0 0.0
      %476 = vmatprep.mubr.f32.mxu0 0.0
      %477 = vmatmul.mubr.f32.gmra.mrb[0].mxu0 %v407
      %v478 = vpop.f32.mrb[0].mxu0
      %v479 = vadd.f32 %v398, %v478
      %v480 = vpop.f32.mrb[0].mxu0
      %481 = vmatprep.mubr.f32.mxu0 0.0
      %482 = vmatmul.mubr.f32.gmra.mrb[0].mxu0 %v410
      %v483 = vpop.f32.mrb[0].mxu0
      %v484 = vadd.f32 %v403, %v483
      %v485 = vpop.f32.mrb[0].mxu0
      %486 = vdwg.mxu0
      %v487 = vld [vmem:[#allocation2 + $0x2] sm:$0xff]
      %v488 = vld [vmem:[#allocation2 + $0xa] sm:$0xff]
      %s489 = scalar_lea.vmem %s1, 160
      %v490 = vld [vmem:[%s489] sm:$0xff]
      %v491 = vld [vmem:[%s489 + $0x8] sm:$0xff]
      %v492 = vld [vmem:[%s489 + $0x10] sm:$0xff]
      %v493 = vld [vmem:[%s489 + $0x18] sm:$0xff]
      %v494 = vld [vmem:[%s489 + $0x20] sm:$0xff]
      %v495 = vld [vmem:[%s489 + $0x28] sm:$0xff]
      %v496 = vld [vmem:[%s489 + $0x30] sm:$0xff]
      %v497 = vld [vmem:[%s489 + $0x38] sm:$0xff]
      %v498 = vld [vmem:[%s489 + $0x40] sm:$0xff]
      %v499 = vld [vmem:[%s489 + $0x48] sm:$0xff]
      %v501 = vsel %vm324, %v487, 0
      %v504 = vsel %vm324, %v488, 0
      %506 = vmatprep.subr.mxu0 0.0
      %507 = vmatpush1.msra.mxu0 %v490
      %508 = vmatprep.subr.mxu0 0.0
      %509 = vmatpush1.msra.mxu0 %v491
      %510 = vmatprep.subr.mxu0 0.0
      %511 = vmatpush1.msra.mxu0 %v492
      %512 = vmatprep.subr.mxu0 0.0
      %513 = vmatpush1.msra.mxu0 %v493
      %514 = vmatprep.subr.mxu0 0.0
      %515 = vmatpush1.msra.mxu0 %v494
      %516 = vmatprep.subr.mxu0 0.0
      %517 = vmatpush1.msra.mxu0 %v495
      %518 = vmatprep.subr.mxu0 0.0
      %519 = vmatpush1.msra.mxu0 %v496
      %520 = vmatprep.subr.mxu0 0.0
      %521 = vmatpush1.msra.mxu0 %v497
      %522 = vmatprep.subr.mxu0 0.0
      %523 = vmatpush1.msra.mxu0 %v498
      %524 = vmatprep.subr.mxu0 0.0
      %525 = vmatpush1.msra.mxu0 %v499
      %526 = vmatprep.subr.mxu0 0.0
      %527 = vmatpush1.msra.mxu0 0.0
      %528 = vmatprep.subr.mxu0 0.0
      %529 = vmatpush1.msra.mxu0 0.0
      %530 = vmatprep.subr.mxu0 0.0
      %531 = vmatpush1.msra.mxu0 0.0
      %532 = vmatprep.subr.mxu0 0.0
      %533 = vmatpush1.msra.mxu0 0.0
      %534 = vmatprep.subr.mxu0 0.0
      %535 = vmatpush1.msra.mxu0 0.0
      %536 = vmatprep.subr.mxu0 0.0
      %537 = vmatpush1.msra.mxu0 0.0
      %538 = vmatprep.subr.mxu0 0.0
      %539 = vmatpush1.msra.mxu0 0.0
      %540 = vmatprep.subr.mxu0 0.0
      %541 = vmatpush1.msra.mxu0 0.0
      %542 = vmatprep.subr.mxu0 0.0
      %543 = vmatpush1.msra.mxu0 0.0
      %544 = vmatprep.subr.mxu0 0.0
      %545 = vmatpush1.msra.mxu0 0.0
      %546 = vmatprep.subr.mxu0 0.0
      %547 = vmatpush1.msra.mxu0 0.0
      %548 = vmatprep.subr.mxu0 0.0
      %549 = vmatpush1.msra.mxu0 0.0
      %550 = vmatprep.subr.mxu0 0.0
      %551 = vmatpush1.msra.mxu0 0.0
      %552 = vmatprep.subr.mxu0 0.0
      %553 = vmatpush1.msra.mxu0 0.0
      %554 = vmatprep.subr.mxu0 0.0
      %555 = vmatpush1.msra.mxu0 0.0
      %556 = vmatprep.subr.mxu0 0.0
      %557 = vmatpush1.msra.mxu0 0.0
      %558 = vmatprep.subr.mxu0 0.0
      %559 = vmatpush1.msra.mxu0 0.0
      %560 = vmatprep.subr.mxu0 0.0
      %561 = vmatpush1.msra.mxu0 0.0
      %562 = vmatprep.subr.mxu0 0.0
      %563 = vmatpush1.msra.mxu0 0.0
      %564 = vmatprep.subr.mxu0 0.0
      %565 = vmatpush1.msra.mxu0 0.0
      %566 = vmatprep.subr.mxu0 0.0
      %567 = vmatpush1.msra.mxu0 0.0
      %568 = vmatprep.subr.mxu0 0.0
      %569 = vmatpush1.msra.mxu0 0.0
      %570 = vmatprep.mubr.f32.mxu0 0.0
      %571 = vmatmul.mubr.f32.gmra.mrb[0].mxu0 %v501
      %v572 = vpop.f32.mrb[0].mxu0
      %v573 = vadd.f32 0.0, %v572
      %v574 = vpop.f32.mrb[0].mxu0
      %575 = vmatprep.mubr.f32.mxu0 0.0
      %576 = vmatmul.mubr.f32.gmra.mrb[0].mxu0 %v504
      %v577 = vpop.f32.mrb[0].mxu0
      %v578 = vadd.f32 0.0, %v577
      %v579 = vpop.f32.mrb[0].mxu0
      %580 = vdwg.mxu0
      %v581 = vadd.f32 %v479, %v573
      %v582 = vadd.f32 %v484, %v578
      %v583 = vld [vmem:[#allocation2 + $0x3] sm:$0xff]
      %v584 = vld [vmem:[#allocation2 + $0xb] sm:$0xff]
      %s585 = scalar_lea.vmem %s1, 240
      %v586 = vld [vmem:[%s585] sm:$0xff]
      %v587 = vld [vmem:[%s585 + $0x8] sm:$0xff]
      %v588 = vld [vmem:[%s585 + $0x10] sm:$0xff]
      %v589 = vld [vmem:[%s585 + $0x18] sm:$0xff]
      %v590 = vld [vmem:[%s585 + $0x20] sm:$0xff]
      %v591 = vld [vmem:[%s585 + $0x28] sm:$0xff]
      %v592 = vld [vmem:[%s585 + $0x30] sm:$0xff]
      %v593 = vld [vmem:[%s585 + $0x38] sm:$0xff]
      %v594 = vld [vmem:[%s585 + $0x40] sm:$0xff]
      %v595 = vld [vmem:[%s585 + $0x48] sm:$0xff]
      %v597 = vsel %vm324, %v583, 0
      %v600 = vsel %vm324, %v584, 0
      %602 = vmatprep.subr.mxu0 0.0
      %603 = vmatpush1.msra.mxu0 %v586
      %604 = vmatprep.subr.mxu0 0.0
      %605 = vmatpush1.msra.mxu0 %v587
      %606 = vmatprep.subr.mxu0 0.0
      %607 = vmatpush1.msra.mxu0 %v588
      %608 = vmatprep.subr.mxu0 0.0
      %609 = vmatpush1.msra.mxu0 %v589
      %610 = vmatprep.subr.mxu0 0.0
      %611 = vmatpush1.msra.mxu0 %v590
      %612 = vmatprep.subr.mxu0 0.0
      %613 = vmatpush1.msra.mxu0 %v591
      %614 = vmatprep.subr.mxu0 0.0
      %615 = vmatpush1.msra.mxu0 %v592
      %616 = vmatprep.subr.mxu0 0.0
      %617 = vmatpush1.msra.mxu0 %v593
      %618 = vmatprep.subr.mxu0 0.0
      %619 = vmatpush1.msra.mxu0 %v594
      %620 = vmatprep.subr.mxu0 0.0
      %621 = vmatpush1.msra.mxu0 %v595
      %622 = vmatprep.subr.mxu0 0.0
      %623 = vmatpush1.msra.mxu0 0.0
      %624 = vmatprep.subr.mxu0 0.0
      %625 = vmatpush1.msra.mxu0 0.0
      %626 = vmatprep.subr.mxu0 0.0
      %627 = vmatpush1.msra.mxu0 0.0
      %628 = vmatprep.subr.mxu0 0.0
      %629 = vmatpush1.msra.mxu0 0.0
      %630 = vmatprep.subr.mxu0 0.0
      %631 = vmatpush1.msra.mxu0 0.0
      %632 = vmatprep.subr.mxu0 0.0
      %633 = vmatpush1.msra.mxu0 0.0
      %634 = vmatprep.subr.mxu0 0.0
      %635 = vmatpush1.msra.mxu0 0.0
      %636 = vmatprep.subr.mxu0 0.0
      %637 = vmatpush1.msra.mxu0 0.0
      %638 = vmatprep.subr.mxu0 0.0
      %639 = vmatpush1.msra.mxu0 0.0
      %640 = vmatprep.subr.mxu0 0.0
      %641 = vmatpush1.msra.mxu0 0.0
      %642 = vmatprep.subr.mxu0 0.0
      %643 = vmatpush1.msra.mxu0 0.0
      %644 = vmatprep.subr.mxu0 0.0
      %645 = vmatpush1.msra.mxu0 0.0
      %646 = vmatprep.subr.mxu0 0.0
      %647 = vmatpush1.msra.mxu0 0.0
      %648 = vmatprep.subr.mxu0 0.0
      %649 = vmatpush1.msra.mxu0 0.0
      %650 = vmatprep.subr.mxu0 0.0
      %651 = vmatpush1.msra.mxu0 0.0
      %652 = vmatprep.subr.mxu0 0.0
      %653 = vmatpush1.msra.mxu0 0.0
      %654 = vmatprep.subr.mxu0 0.0
      %655 = vmatpush1.msra.mxu0 0.0
      %656 = vmatprep.subr.mxu0 0.0
      %657 = vmatpush1.msra.mxu0 0.0
      %658 = vmatprep.subr.mxu0 0.0
      %659 = vmatpush1.msra.mxu0 0.0
      %660 = vmatprep.subr.mxu0 0.0
      %661 = vmatpush1.msra.mxu0 0.0
      %662 = vmatprep.subr.mxu0 0.0
      %663 = vmatpush1.msra.mxu0 0.0
      %664 = vmatprep.subr.mxu0 0.0
      %665 = vmatpush1.msra.mxu0 0.0
      %666 = vmatprep.mubr.f32.mxu0 0.0
      %667 = vmatmul.mubr.f32.gmra.mrb[0].mxu0 %v597
      %v668 = vpop.f32.mrb[0].mxu0
      %v669 = vadd.f32 0.0, %v668
      %v670 = vpop.f32.mrb[0].mxu0
      %671 = vmatprep.mubr.f32.mxu0 0.0
      %672 = vmatmul.mubr.f32.gmra.mrb[0].mxu0 %v600
      %v673 = vpop.f32.mrb[0].mxu0
      %v674 = vadd.f32 0.0, %v673
      %v675 = vpop.f32.mrb[0].mxu0
      %676 = vdwg.mxu0
      %v677 = vadd.f32 %v581, %v669
      %v678 = vadd.f32 %v582, %v674
      %v679 = vld [vmem:[#allocation2 + $0x4] sm:$0xff]
      %v680 = vld [vmem:[#allocation2 + $0xc] sm:$0xff]
      %s681 = scalar_lea.vmem %s1, 320
      %v682 = vld [vmem:[%s681] sm:$0xff]
      %v683 = vld [vmem:[%s681 + $0x8] sm:$0xff]
      %v684 = vld [vmem:[%s681 + $0x10] sm:$0xff]
      %v685 = vld [vmem:[%s681 + $0x18] sm:$0xff]
      %v686 = vld [vmem:[%s681 + $0x20] sm:$0xff]
      %v687 = vld [vmem:[%s681 + $0x28] sm:$0xff]
      %v688 = vld [vmem:[%s681 + $0x30] sm:$0xff]
      %v689 = vld [vmem:[%s681 + $0x38] sm:$0xff]
      %v690 = vld [vmem:[%s681 + $0x40] sm:$0xff]
      %v691 = vld [vmem:[%s681 + $0x48] sm:$0xff]
      %v693 = vsel %vm324, %v679, 0
      %v696 = vsel %vm324, %v680, 0
      %698 = vmatprep.subr.mxu0 0.0
      %699 = vmatpush1.msra.mxu0 %v682
      %700 = vmatprep.subr.mxu0 0.0
      %701 = vmatpush1.msra.mxu0 %v683
      %702 = vmatprep.subr.mxu0 0.0
      %703 = vmatpush1.msra.mxu0 %v684
      %704 = vmatprep.subr.mxu0 0.0
      %705 = vmatpush1.msra.mxu0 %v685
      %706 = vmatprep.subr.mxu0 0.0
      %707 = vmatpush1.msra.mxu0 %v686
      %708 = vmatprep.subr.mxu0 0.0
      %709 = vmatpush1.msra.mxu0 %v687
      %710 = vmatprep.subr.mxu0 0.0
      %711 = vmatpush1.msra.mxu0 %v688
      %712 = vmatprep.subr.mxu0 0.0
      %713 = vmatpush1.msra.mxu0 %v689
      %714 = vmatprep.subr.mxu0 0.0
      %715 = vmatpush1.msra.mxu0 %v690
      %716 = vmatprep.subr.mxu0 0.0
      %717 = vmatpush1.msra.mxu0 %v691
      %718 = vmatprep.subr.mxu0 0.0
      %719 = vmatpush1.msra.mxu0 0.0
      %720 = vmatprep.subr.mxu0 0.0
      %721 = vmatpush1.msra.mxu0 0.0
      %722 = vmatprep.subr.mxu0 0.0
      %723 = vmatpush1.msra.mxu0 0.0
      %724 = vmatprep.subr.mxu0 0.0
      %725 = vmatpush1.msra.mxu0 0.0
      %726 = vmatprep.subr.mxu0 0.0
      %727 = vmatpush1.msra.mxu0 0.0
      %728 = vmatprep.subr.mxu0 0.0
      %729 = vmatpush1.msra.mxu0 0.0
      %730 = vmatprep.subr.mxu0 0.0
      %731 = vmatpush1.msra.mxu0 0.0
      %732 = vmatprep.subr.mxu0 0.0
      %733 = vmatpush1.msra.mxu0 0.0
      %734 = vmatprep.subr.mxu0 0.0
      %735 = vmatpush1.msra.mxu0 0.0
      %736 = vmatprep.subr.mxu0 0.0
      %737 = vmatpush1.msra.mxu0 0.0
      %738 = vmatprep.subr.mxu0 0.0
      %739 = vmatpush1.msra.mxu0 0.0
      %740 = vmatprep.subr.mxu0 0.0
      %741 = vmatpush1.msra.mxu0 0.0
      %742 = vmatprep.subr.mxu0 0.0
      %743 = vmatpush1.msra.mxu0 0.0
      %744 = vmatprep.subr.mxu0 0.0
      %745 = vmatpush1.msra.mxu0 0.0
      %746 = vmatprep.subr.mxu0 0.0
      %747 = vmatpush1.msra.mxu0 0.0
      %748 = vmatprep.subr.mxu0 0.0
      %749 = vmatpush1.msra.mxu0 0.0
      %750 = vmatprep.subr.mxu0 0.0
      %751 = vmatpush1.msra.mxu0 0.0
      %752 = vmatprep.subr.mxu0 0.0
      %753 = vmatpush1.msra.mxu0 0.0
      %754 = vmatprep.subr.mxu0 0.0
      %755 = vmatpush1.msra.mxu0 0.0
      %756 = vmatprep.subr.mxu0 0.0
      %757 = vmatpush1.msra.mxu0 0.0
      %758 = vmatprep.subr.mxu0 0.0
      %759 = vmatpush1.msra.mxu0 0.0
      %760 = vmatprep.subr.mxu0 0.0
      %761 = vmatpush1.msra.mxu0 0.0
      %762 = vmatprep.mubr.f32.mxu0 0.0
      %763 = vmatmul.mubr.f32.gmra.mrb[0].mxu0 %v693
      %v764 = vpop.f32.mrb[0].mxu0
      %v765 = vadd.f32 0.0, %v764
      %v766 = vpop.f32.mrb[0].mxu0
      %767 = vmatprep.mubr.f32.mxu0 0.0
      %768 = vmatmul.mubr.f32.gmra.mrb[0].mxu0 %v696
      %v769 = vpop.f32.mrb[0].mxu0
      %v770 = vadd.f32 0.0, %v769
      %v771 = vpop.f32.mrb[0].mxu0
      %772 = vdwg.mxu0
      %v773 = vadd.f32 %v677, %v765
      %v774 = vadd.f32 %v678, %v770
      %775 = vst [vmem:[%s266] sm:$0xff] %v773
      %776 = vst [vmem:[%s266 + $0x8] sm:$0xff] %v774
      %v777 = vmul.f32 %v773, 30.0
      %v778 = vmul.f32 %v774, 30.0
      %v779 = vand.u32 2147483647, %v777
      %vm780 = vcmp.le.f32.partialorder %v779, 0.7853982
      %vm781 = vcmp.lt.s32.totalorder %v777, 0
      %v782 = vand.u32 %v777, 2139095040
      %v783 = vshrl.u32 %v782, 23
      %v784 = vsub.s32 %v783, 127
      %v785 = vand.u32 2147483647, %v777
      %v786 = vand.u32 %v785, 8388607
      %v787 = vor.u32 %v786, 8388608
      %v788 = vsub.s32 0, %v787
      %v789 = vadd.s32 %v784, 1
      %vm790 = vcmp.gt.s32.totalorder %v789, 0
      %v791 = vsel %vm790, %v789, 0
      %v792 = vshrl.u32 %v791, 5
      %v793 = vand.u32 %v791, 31
      %v794 = vsub.s32 32, %v793
      %v795 = vshrl.u32 683565275, %v794
      %v796 = vshll.u32 683565275, %v793
      %v797 = vshrl.u32 2475754826, %v794
      %v798 = vor.u32 %v796, %v797
      %v799 = vshll.u32 2475754826, %v793
      %v800 = vshrl.u32 2131351028, %v794
      %v801 = vor.u32 %v799, %v800
      %v802 = vshll.u32 2131351028, %v793
      %v803 = vshrl.u32 2102212464, %v794
      %v804 = vor.u32 %v802, %v803
      %v805 = vshll.u32 2102212464, %v793
      %v806 = vshrl.u32 920167782, %v794
      %v807 = vor.u32 %v805, %v806
      %v808 = vshll.u32 920167782, %v793
      %v809 = vshrl.u32 1326507024, %v794
      %v810 = vor.u32 %v808, %v809
      %vm811 = vcmp.lt.s32.totalorder %v792, 1
      %vm812 = vcmp.lt.s32.totalorder %v792, 2
      %vm813 = vcmp.lt.s32.totalorder %v792, 3
      %vm814 = vcmp.lt.s32.totalorder %v792, 4
      %v815 = vsel %vm811, %v795, %v798
      %v816 = vsel %vm814, %v804, 2102212464
      %v817 = vsel %vm813, %v801, %v816
      %v818 = vsel %vm812, %v815, %v817
      %v819 = vsel %vm811, %v798, %v801
      %v820 = vsel %vm814, %v807, 920167782
      %v821 = vsel %vm813, %v804, %v820
      %v822 = vsel %vm812, %v819, %v821
      %v823 = vsel %vm811, %v801, %v804
      %v824 = vsel %vm814, %v810, 1326507024
      %v825 = vsel %vm813, %v807, %v824
      %v826 = vsel %vm812, %v823, %v825
      %v827 = vshll.u32 %v787, 8
      %v828 = vmul.u32.u64.compose %v827, %v826
      %v829 = vextract.low.u32 %v828
      %v830 = vextract.high.u32 %v828
      %v831 = vmul.u32.u64.compose %v827, %v822
      %v832 = vextract.low.u32 %v831
      %v833 = vextract.high.u32 %v831
      %v834 = vmul.u32 %v827, %v818
      %v835 = vadd.s32 %v830, %v832
      %vm836 = vc.u32 %v830, %v832
      %v837 = vadd.s32 %v833, 1
      %v838 = vsel %vm836, %v837, %v833
      %v839 = vadd.s32 %v834, %v838
      %v840 = vadd.s32 %v839, 536870912
      %v841 = vshrl.u32 %v840, 30
      %v842 = vshll.u32 %v841, 30
      %v843 = vsub.s32 %v839, %v842
      %vm844 = vcmp.lt.s32.totalorder %v843, 0
      %v845 = vsub.s32 0, %v843
      %v846 = vsel %vm844, %v845, %v843
      %v847 = vclz %v846
      %v848 = vsub.s32 %v847, 2
      %vm849 = vcmp.gt.s32.totalorder 0, %v848
      %v850 = vsel %vm849, 0, %v848
      %v851 = vsub.s32 32, %v850
      %v852 = vshll.u32 %v843, %v850
      %v853 = vshrl.u32 %v835, %v851
      %v854 = vor.u32 %v852, %v853
      %v855 = vsub.s32 4294967266, %v850
      %v856 = vadd.s32 %v855, 127
      %v857 = vshll.u32 %v856, 23
      %v858 = vor.u32 4788187, %v857
      %v859 = vand.u32 2147483647, %v858
      %v861 = vcvt.s32.f32 %v854
      %v862 = vmul.f32 %v861, %v859
      %v863 = vxor.u32 %v862, 2147483648
      %v864 = vsel %vm781, %v863, %v862
      %v865 = vsub.s32 4, %v841
      %v866 = vsel %vm781, %v865, %v841
      %v867 = vsel %vm780, %v777, %v864
      %v868 = vsel %vm780, 0, %v866
      %v869 = vcosq.f32.pop %v867
      %v870 = vsinq.f32.pop %v867
      %vm871 = vweird.f32 %v777
      %v872 = vadd.s32 %v868, 3
      %v873 = vand.u32 %v872, 3
      %vm874 = vcmp.lt.s32.totalorder %v873, 2
      %vm875 = vcmp.eq.s32.totalorder %v873, 0
      %v876 = vxor.u32 %v870, 2147483648
      %v877 = vsel %vm875, %v869, %v876
      %vm878 = vcmp.eq.s32.totalorder %v873, 2
      %v879 = vxor.u32 %v869, 2147483648
      %v880 = vsel %vm878, %v879, %v870
      %v881 = vsel %vm874, %v877, %v880
      %v882 = vsel %vm871, nan, %v881
      %v883 = vand.u32 2147483647, %v778
      %vm884 = vcmp.le.f32.partialorder %v883, 0.7853982
      %vm885 = vcmp.lt.s32.totalorder %v778, 0
      %v886 = vand.u32 %v778, 2139095040
      %v887 = vshrl.u32 %v886, 23
      %v888 = vsub.s32 %v887, 127
      %v889 = vand.u32 2147483647, %v778
      %v890 = vand.u32 %v889, 8388607
      %v891 = vor.u32 %v890, 8388608
      %v892 = vsub.s32 0, %v891
      %v893 = vadd.s32 %v888, 1
      %vm894 = vcmp.gt.s32.totalorder %v893, 0
      %v895 = vsel %vm894, %v893, 0
      %v896 = vshrl.u32 %v895, 5
      %v897 = vand.u32 %v895, 31
      %v898 = vsub.s32 32, %v897
      %v899 = vshrl.u32 683565275, %v898
      %v900 = vshll.u32 683565275, %v897
      %v901 = vshrl.u32 2475754826, %v898
      %v902 = vor.u32 %v900, %v901
      %v903 = vshll.u32 2475754826, %v897
      %v904 = vshrl.u32 2131351028, %v898
      %v905 = vor.u32 %v903, %v904
      %v906 = vshll.u32 2131351028, %v897
      %v907 = vshrl.u32 2102212464, %v898
      %v908 = vor.u32 %v906, %v907
      %v909 = vshll.u32 2102212464, %v897
      %v910 = vshrl.u32 920167782, %v898
      %v911 = vor.u32 %v909, %v910
      %v912 = vshll.u32 920167782, %v897
      %v913 = vshrl.u32 1326507024, %v898
      %v914 = vor.u32 %v912, %v913
      %vm915 = vcmp.lt.s32.totalorder %v896, 1
      %vm916 = vcmp.lt.s32.totalorder %v896, 2
      %vm917 = vcmp.lt.s32.totalorder %v896, 3
      %vm918 = vcmp.lt.s32.totalorder %v896, 4
      %v919 = vsel %vm915, %v899, %v902
      %v920 = vsel %vm918, %v908, 2102212464
      %v921 = vsel %vm917, %v905, %v920
      %v922 = vsel %vm916, %v919, %v921
      %v923 = vsel %vm915, %v902, %v905
      %v924 = vsel %vm918, %v911, 920167782
      %v925 = vsel %vm917, %v908, %v924
      %v926 = vsel %vm916, %v923, %v925
      %v927 = vsel %vm915, %v905, %v908
      %v928 = vsel %vm918, %v914, 1326507024
      %v929 = vsel %vm917, %v911, %v928
      %v930 = vsel %vm916, %v927, %v929
      %v931 = vshll.u32 %v891, 8
      %v932 = vmul.u32.u64.compose %v931, %v930
      %v933 = vextract.low.u32 %v932
      %v934 = vextract.high.u32 %v932
      %v935 = vmul.u32.u64.compose %v931, %v926
      %v936 = vextract.low.u32 %v935
      %v937 = vextract.high.u32 %v935
      %v938 = vmul.u32 %v931, %v922
      %v939 = vadd.s32 %v934, %v936
      %vm940 = vc.u32 %v934, %v936
      %v941 = vadd.s32 %v937, 1
      %v942 = vsel %vm940, %v941, %v937
      %v943 = vadd.s32 %v938, %v942
      %v944 = vadd.s32 %v943, 536870912
      %v945 = vshrl.u32 %v944, 30
      %v946 = vshll.u32 %v945, 30
      %v947 = vsub.s32 %v943, %v946
      %vm948 = vcmp.lt.s32.totalorder %v947, 0
      %v949 = vsub.s32 0, %v947
      %v950 = vsel %vm948, %v949, %v947
      %v951 = vclz %v950
      %v952 = vsub.s32 %v951, 2
      %vm953 = vcmp.gt.s32.totalorder 0, %v952
      %v954 = vsel %vm953, 0, %v952
      %v955 = vsub.s32 32, %v954
      %v956 = vshll.u32 %v947, %v954
      %v957 = vshrl.u32 %v939, %v955
      %v958 = vor.u32 %v956, %v957
      %v959 = vsub.s32 4294967266, %v954
      %v960 = vadd.s32 %v959, 127
      %v961 = vshll.u32 %v960, 23
      %v962 = vor.u32 4788187, %v961
      %v963 = vand.u32 2147483647, %v962
      %v965 = vcvt.s32.f32 %v958
      %v966 = vmul.f32 %v965, %v963
      %v967 = vxor.u32 %v966, 2147483648
      %v968 = vsel %vm885, %v967, %v966
      %v969 = vsub.s32 4, %v945
      %v970 = vsel %vm885, %v969, %v945
      %v971 = vsel %vm884, %v778, %v968
      %v972 = vsel %vm884, 0, %v970
      %v973 = vcosq.f32.pop %v971
      %v974 = vsinq.f32.pop %v971
      %vm975 = vweird.f32 %v778
      %v976 = vadd.s32 %v972, 3
      %v977 = vand.u32 %v976, 3
      %vm978 = vcmp.lt.s32.totalorder %v977, 2
      %vm979 = vcmp.eq.s32.totalorder %v977, 0
      %v980 = vxor.u32 %v974, 2147483648
      %v981 = vsel %vm979, %v973, %v980
      %vm982 = vcmp.eq.s32.totalorder %v977, 2
      %v983 = vxor.u32 %v973, 2147483648
      %v984 = vsel %vm982, %v983, %v974
      %v985 = vsel %vm978, %v981, %v984
      %v986 = vsel %vm975, nan, %v985
      %987 = vst [vmem:[#allocation3] sm:$0x3] 0.0
      %vm988 = vcmask 254976
      %989 = vst.msk [vmem:[#allocation3 + $0x8] sm:$0x3] %vm988, 0.0
      %990 = vst [vmem:[#allocation3 + $0x20] sm:$0xc] 0.0
      %vm991 = vcmask 257026
      %992 = vst.msk [vmem:[#allocation3 + $0x28] sm:$0xc] %vm991, 0.0
      %vm993 = vcmask 130050
      %994 = vst.msk [vmem:[#allocation3] sm:$0xfc] %vm993, 0.0
      %vm995 = vcmask 130048
      %996 = vst.msk [vmem:[#allocation3 + $0x10] sm:$0xff] %vm995, 0.0
      %vm997 = vcmask 123904
      %998 = vst.msk [vmem:[#allocation3 + $0x20] sm:$0x3] %vm997, 0.0
      %vm999 = vcmask 261250
      %1000 = vst.msk [vmem:[#allocation3 + $0x8] sm:$0xfc] %vm999, 0.0
      %vm1001 = vcmask 261248
      %1002 = vst.msk [vmem:[#allocation3 + $0x18] sm:$0xff] %vm1001, 0.0
      %vm1003 = vcmask 255104
      %1004 = vst.msk [vmem:[#allocation3 + $0x28] sm:$0x3] %vm1003, 0.0
      %vm1007 = vcmask 1041408
      %v1008 = vrot.slane %v882, 6
      %v1009 = vrot.slane %v986, 6
      %v1010 = vsel %vm1007, %v1008, %v1009
      %1011 = vrot.lane.b32.xlu0 %v1008, 16
      %v1012 = vpop.permute.xlu0 %1011
      %1013 = vrot.lane.b32.xlu0 %v1010, 16
      %v1014 = vpop.permute.xlu0 %1013
      %1015 = vrot.lane.b32.xlu0 %v1009, 16
      %v1016 = vpop.permute.xlu0 %1015
      %vm1020 = vcmask 1047682
      %1021 = vst.msk [vmem:[#allocation3] sm:$0xfc] %vm1020, %v1012
      %1022 = vst.msk [vmem:[#allocation3 + $0x8] sm:$0xfc] %vm993, %v1012
      %vm1023 = vcmask 1047680
      %1024 = vst.msk [vmem:[#allocation3 + $0x10] sm:$0xff] %vm1023, %v1014
      %1025 = vst.msk [vmem:[#allocation3 + $0x18] sm:$0xff] %vm995, %v1014
      %vm1026 = vcmask 1041536
      %1027 = vst.msk [vmem:[#allocation3 + $0x20] sm:$0x3] %vm1026, %v1016
      %1028 = vst.msk [vmem:[#allocation3 + $0x28] sm:$0x3] %vm997, %v1016
      %v1029 = vld [vmem:[#allocation3] sm:$0xff]
      %v1030 = vld [vmem:[#allocation3 + $0x8] sm:$0xff]
      %v1031 = vld [vmem:[#allocation3 + $0x10] sm:$0xff]
      %v1032 = vld [vmem:[#allocation3 + $0x18] sm:$0xff]
      %v1033 = vld [vmem:[%s2] sm:$0xff]
      %v1034 = vld [vmem:[%s2 + $0x8] sm:$0xff]
      %v1035 = vld [vmem:[%s2 + $0x10] sm:$0xff]
      %v1036 = vld [vmem:[%s2 + $0x18] sm:$0xff]
      %v1037 = vld [vmem:[%s2 + $0x20] sm:$0xff]
      %v1038 = vld [vmem:[%s2 + $0x28] sm:$0xff]
      %v1039 = vld [vmem:[%s2 + $0x30] sm:$0xff]
      %v1040 = vld [vmem:[%s2 + $0x38] sm:$0xff]
      %v1041 = vld [vmem:[%s2 + $0x40] sm:$0xff]
      %v1042 = vld [vmem:[%s2 + $0x48] sm:$0xff]
      %v1043 = vld [vmem:[%s2 + $0x50] sm:$0xff]
      %v1044 = vld [vmem:[%s2 + $0x58] sm:$0xff]
      %v1045 = vld [vmem:[%s2 + $0x60] sm:$0xff]
      %v1046 = vld [vmem:[%s2 + $0x68] sm:$0xff]
      %v1047 = vld [vmem:[%s2 + $0x70] sm:$0xff]
      %v1048 = vld [vmem:[%s2 + $0x78] sm:$0xff]
      %v1049 = vld [vmem:[%s2 + $0x80] sm:$0xff]
      %v1050 = vld [vmem:[%s2 + $0x88] sm:$0xff]
      %v1051 = vld [vmem:[%s2 + $0x90] sm:$0xff]
      %v1052 = vld [vmem:[%s2 + $0x98] sm:$0xff]
      %v1053 = vld [vmem:[#allocation3] sm:$0xfe]
      %v1054 = vld [vmem:[#allocation3 + $0x8] sm:$0xfe]
      %v1055 = vld [vmem:[#allocation3 + $0x20] sm:$0x1]
      %v1056 = vld [vmem:[#allocation3 + $0x28] sm:$0x1]
      %s1057 = scalar_lea.vmem %s2, 160
      %v1058 = vld [vmem:[%s1057] sm:$0xff]
      %v1059 = vld [vmem:[%s1057 + $0x8] sm:$0xff]
      %v1060 = vld [vmem:[%s1057 + $0x10] sm:$0xff]
      %v1061 = vld [vmem:[%s1057 + $0x18] sm:$0xff]
      %v1062 = vld [vmem:[%s1057 + $0x20] sm:$0xff]
      %v1063 = vld [vmem:[%s1057 + $0x28] sm:$0xff]
      %v1064 = vld [vmem:[%s1057 + $0x30] sm:$0xff]
      %v1065 = vld [vmem:[%s1057 + $0x38] sm:$0xff]
      %v1066 = vld [vmem:[%s1057 + $0x40] sm:$0xff]
      %v1067 = vld [vmem:[%s1057 + $0x48] sm:$0xff]
      %v1068 = vld [vmem:[%s1057 + $0x50] sm:$0xff]
      %v1069 = vld [vmem:[%s1057 + $0x58] sm:$0xff]
      %v1070 = vld [vmem:[%s1057 + $0x60] sm:$0xff]
      %v1071 = vld [vmem:[%s1057 + $0x68] sm:$0xff]
      %v1072 = vld [vmem:[%s1057 + $0x70] sm:$0xff]
      %v1073 = vld [vmem:[%s1057 + $0x78] sm:$0xff]
      %v1074 = vld [vmem:[%s1057 + $0x80] sm:$0xff]
      %v1075 = vld [vmem:[%s1057 + $0x88] sm:$0xff]
      %v1076 = vld [vmem:[%s1057 + $0x90] sm:$0xff]
      %v1077 = vld [vmem:[%s1057 + $0x98] sm:$0xff]
      %vm1084 = vcmask 1046528
      %v1085 = vrot.slane %v1053, 1
      %v1086 = vrot.slane %v1031, 1
      %v1087 = vsel %vm1084, %v1085, %v1086
      %v1088 = vrot.slane %v1054, 1
      %v1089 = vrot.slane %v1032, 1
      %v1090 = vsel %vm1084, %v1088, %v1089
      %v1091 = vrot.slane %v1055, 1
      %v1092 = vsel %vm1084, %v1086, %v1091
      %v1093 = vrot.slane %v1056, 1
      %v1094 = vsel %vm1084, %v1089, %v1093
      %vm1097 = vcmask 261120
      %v1098 = vsel %vm1097, %v1090, 0
      %v1100 = vsel %vm1097, %v1094, 0
      %1102 = vmatprep.subr.mxu0 0.0
      %1103 = vmatpush1.msra.mxu0 %v1058
      %1104 = vmatprep.subr.mxu0 0.0
      %1105 = vmatpush1.msra.mxu0 %v1059
      %1106 = vmatprep.subr.mxu0 0.0
      %1107 = vmatpush1.msra.mxu0 %v1060
      %1108 = vmatprep.subr.mxu0 0.0
      %1109 = vmatpush1.msra.mxu0 %v1061
      %1110 = vmatprep.subr.mxu0 0.0
      %1111 = vmatpush1.msra.mxu0 %v1062
      %1112 = vmatprep.subr.mxu0 0.0
      %1113 = vmatpush1.msra.mxu0 %v1063
      %1114 = vmatprep.subr.mxu0 0.0
      %1115 = vmatpush1.msra.mxu0 %v1064
      %1116 = vmatprep.subr.mxu0 0.0
      %1117 = vmatpush1.msra.mxu0 %v1065
      %1118 = vmatprep.subr.mxu0 0.0
      %1119 = vmatpush1.msra.mxu0 %v1066
      %1120 = vmatprep.subr.mxu0 0.0
      %1121 = vmatpush1.msra.mxu0 %v1067
      %1122 = vmatprep.subr.mxu0 0.0
      %1123 = vmatpush1.msra.mxu0 %v1068
      %1124 = vmatprep.subr.mxu0 0.0
      %1125 = vmatpush1.msra.mxu0 %v1069
      %1126 = vmatprep.subr.mxu0 0.0
      %1127 = vmatpush1.msra.mxu0 %v1070
      %1128 = vmatprep.subr.mxu0 0.0
      %1129 = vmatpush1.msra.mxu0 %v1071
      %1130 = vmatprep.subr.mxu0 0.0
      %1131 = vmatpush1.msra.mxu0 %v1072
      %1132 = vmatprep.subr.mxu0 0.0
      %1133 = vmatpush1.msra.mxu0 %v1073
      %1134 = vmatprep.subr.mxu0 0.0
      %1135 = vmatpush1.msra.mxu0 %v1074
      %1136 = vmatprep.subr.mxu0 0.0
      %1137 = vmatpush1.msra.mxu0 %v1075
      %1138 = vmatprep.subr.mxu0 0.0
      %1139 = vmatpush1.msra.mxu0 %v1076
      %1140 = vmatprep.subr.mxu0 0.0
      %1141 = vmatpush1.msra.mxu0 %v1077
      %1142 = vmatprep.subr.mxu0 0.0
      %1143 = vmatpush1.msra.mxu0 0.0
      %1144 = vmatprep.subr.mxu0 0.0
      %1145 = vmatpush1.msra.mxu0 0.0
      %1146 = vmatprep.subr.mxu0 0.0
      %1147 = vmatpush1.msra.mxu0 0.0
      %1148 = vmatprep.subr.mxu0 0.0
      %1149 = vmatpush1.msra.mxu0 0.0
      %1150 = vmatprep.subr.mxu0 0.0
      %1151 = vmatpush1.msra.mxu0 0.0
      %1152 = vmatprep.subr.mxu0 0.0
      %1153 = vmatpush1.msra.mxu0 0.0
      %1154 = vmatprep.subr.mxu0 0.0
      %1155 = vmatpush1.msra.mxu0 0.0
      %1156 = vmatprep.subr.mxu0 0.0
      %1157 = vmatpush1.msra.mxu0 0.0
      %1158 = vmatprep.subr.mxu0 0.0
      %1159 = vmatpush1.msra.mxu0 0.0
      %1160 = vmatprep.subr.mxu0 0.0
      %1161 = vmatpush1.msra.mxu0 0.0
      %1162 = vmatprep.subr.mxu0 0.0
      %1163 = vmatpush1.msra.mxu0 0.0
      %1164 = vmatprep.subr.mxu0 0.0
      %1165 = vmatpush1.msra.mxu0 0.0
      %1166 = vmatprep.mubr.f32.mxu0 %v1098
      %1167 = vmatmul.mubr.f32.gmra.mrb[0].mxu0 %v1087
      %v1168 = vpop.f32.mrb[0].mxu0
      %v1169 = vadd.f32 0.0, %v1168
      %v1170 = vpop.f32.mrb[0].mxu0
      %1171 = vmatprep.mubr.f32.mxu0 %v1100
      %1172 = vmatmul.mubr.f32.gmra.mrb[0].mxu0 %v1092
      %v1173 = vpop.f32.mrb[0].mxu0
      %v1174 = vadd.f32 0.0, %v1173
      %v1175 = vpop.f32.mrb[0].mxu0
      %1176 = vdwg.mxu0
      %v1178 = vsel %vm1097, %v1030, 0
      %v1180 = vsel %vm1097, %v1032, 0
      %1182 = vmatprep.subr.mxu0 0.0
      %1183 = vmatpush1.msra.mxu0 %v1033
      %1184 = vmatprep.subr.mxu0 0.0
      %1185 = vmatpush1.msra.mxu0 %v1034
      %1186 = vmatprep.subr.mxu0 0.0
      %1187 = vmatpush1.msra.mxu0 %v1035
      %1188 = vmatprep.subr.mxu0 0.0
      %1189 = vmatpush1.msra.mxu0 %v1036
      %1190 = vmatprep.subr.mxu0 0.0
      %1191 = vmatpush1.msra.mxu0 %v1037
      %1192 = vmatprep.subr.mxu0 0.0
      %1193 = vmatpush1.msra.mxu0 %v1038
      %1194 = vmatprep.subr.mxu0 0.0
      %1195 = vmatpush1.msra.mxu0 %v1039
      %1196 = vmatprep.subr.mxu0 0.0
      %1197 = vmatpush1.msra.mxu0 %v1040
      %1198 = vmatprep.subr.mxu0 0.0
      %1199 = vmatpush1.msra.mxu0 %v1041
      %1200 = vmatprep.subr.mxu0 0.0
      %1201 = vmatpush1.msra.mxu0 %v1042
      %1202 = vmatprep.subr.mxu0 0.0
      %1203 = vmatpush1.msra.mxu0 %v1043
      %1204 = vmatprep.subr.mxu0 0.0
      %1205 = vmatpush1.msra.mxu0 %v1044
      %1206 = vmatprep.subr.mxu0 0.0
      %1207 = vmatpush1.msra.mxu0 %v1045
      %1208 = vmatprep.subr.mxu0 0.0
      %1209 = vmatpush1.msra.mxu0 %v1046
      %1210 = vmatprep.subr.mxu0 0.0
      %1211 = vmatpush1.msra.mxu0 %v1047
      %1212 = vmatprep.subr.mxu0 0.0
      %1213 = vmatpush1.msra.mxu0 %v1048
      %1214 = vmatprep.subr.mxu0 0.0
      %1215 = vmatpush1.msra.mxu0 %v1049
      %1216 = vmatprep.subr.mxu0 0.0
      %1217 = vmatpush1.msra.mxu0 %v1050
      %1218 = vmatprep.subr.mxu0 0.0
      %1219 = vmatpush1.msra.mxu0 %v1051
      %1220 = vmatprep.subr.mxu0 0.0
      %1221 = vmatpush1.msra.mxu0 %v1052
      %1222 = vmatprep.subr.mxu0 0.0
      %1223 = vmatpush1.msra.mxu0 0.0
      %1224 = vmatprep.subr.mxu0 0.0
      %1225 = vmatpush1.msra.mxu0 0.0
      %1226 = vmatprep.subr.mxu0 0.0
      %1227 = vmatpush1.msra.mxu0 0.0
      %1228 = vmatprep.subr.mxu0 0.0
      %1229 = vmatpush1.msra.mxu0 0.0
      %1230 = vmatprep.subr.mxu0 0.0
      %1231 = vmatpush1.msra.mxu0 0.0
      %1232 = vmatprep.subr.mxu0 0.0
      %1233 = vmatpush1.msra.mxu0 0.0
      %1234 = vmatprep.subr.mxu0 0.0
      %1235 = vmatpush1.msra.mxu0 0.0
      %1236 = vmatprep.subr.mxu0 0.0
      %1237 = vmatpush1.msra.mxu0 0.0
      %1238 = vmatprep.subr.mxu0 0.0
      %1239 = vmatpush1.msra.mxu0 0.0
      %1240 = vmatprep.subr.mxu0 0.0
      %1241 = vmatpush1.msra.mxu0 0.0
      %1242 = vmatprep.subr.mxu0 0.0
      %1243 = vmatpush1.msra.mxu0 0.0
      %1244 = vmatprep.subr.mxu0 0.0
      %1245 = vmatpush1.msra.mxu0 0.0
      %1246 = vmatprep.mubr.f32.mxu0 %v1178
      %1247 = vmatmul.mubr.f32.gmra.mrb[0].mxu0 %v1029
      %v1248 = vpop.f32.mrb[0].mxu0
      %v1249 = vadd.f32 %v1169, %v1248
      %v1250 = vpop.f32.mrb[0].mxu0
      %1251 = vmatprep.mubr.f32.mxu0 %v1180
      %1252 = vmatmul.mubr.f32.gmra.mrb[0].mxu0 %v1031
      %v1253 = vpop.f32.mrb[0].mxu0
      %v1254 = vadd.f32 %v1174, %v1253
      %v1255 = vpop.f32.mrb[0].mxu0
      %1256 = vdwg.mxu0
      %v1257 = vld [vmem:[#allocation3] sm:$0xfc]
      %v1258 = vld [vmem:[#allocation3 + $0x8] sm:$0xfc]
      %v1259 = vld [vmem:[#allocation3 + $0x20] sm:$0x3]
      %v1260 = vld [vmem:[#allocation3 + $0x28] sm:$0x3]
      %s1261 = scalar_lea.vmem %s2, 320
      %v1262 = vld [vmem:[%s1261] sm:$0xff]
      %v1263 = vld [vmem:[%s1261 + $0x8] sm:$0xff]
      %v1264 = vld [vmem:[%s1261 + $0x10] sm:$0xff]
      %v1265 = vld [vmem:[%s1261 + $0x18] sm:$0xff]
      %v1266 = vld [vmem:[%s1261 + $0x20] sm:$0xff]
      %v1267 = vld [vmem:[%s1261 + $0x28] sm:$0xff]
      %v1268 = vld [vmem:[%s1261 + $0x30] sm:$0xff]
      %v1269 = vld [vmem:[%s1261 + $0x38] sm:$0xff]
      %v1270 = vld [vmem:[%s1261 + $0x40] sm:$0xff]
      %v1271 = vld [vmem:[%s1261 + $0x48] sm:$0xff]
      %v1272 = vld [vmem:[%s1261 + $0x50] sm:$0xff]
      %v1273 = vld [vmem:[%s1261 + $0x58] sm:$0xff]
      %v1274 = vld [vmem:[%s1261 + $0x60] sm:$0xff]
      %v1275 = vld [vmem:[%s1261 + $0x68] sm:$0xff]
      %v1276 = vld [vmem:[%s1261 + $0x70] sm:$0xff]
      %v1277 = vld [vmem:[%s1261 + $0x78] sm:$0xff]
      %v1278 = vld [vmem:[%s1261 + $0x80] sm:$0xff]
      %v1279 = vld [vmem:[%s1261 + $0x88] sm:$0xff]
      %v1280 = vld [vmem:[%s1261 + $0x90] sm:$0xff]
      %v1281 = vld [vmem:[%s1261 + $0x98] sm:$0xff]
      %vm1286 = vcmask 1045504
      %v1287 = vrot.slane %v1257, 2
      %v1288 = vrot.slane %v1031, 2
      %v1289 = vsel %vm1286, %v1287, %v1288
      %v1290 = vrot.slane %v1258, 2
      %v1291 = vrot.slane %v1032, 2
      %v1292 = vsel %vm1286, %v1290, %v1291
      %v1293 = vrot.slane %v1259, 2
      %v1294 = vsel %vm1286, %v1288, %v1293
      %v1295 = vrot.slane %v1260, 2
      %v1296 = vsel %vm1286, %v1291, %v1295
      %v1299 = vsel %vm1097, %v1292, 0
      %v1301 = vsel %vm1097, %v1296, 0
      %1303 = vmatprep.subr.mxu0 0.0
      %1304 = vmatpush1.msra.mxu0 %v1262
      %1305 = vmatprep.subr.mxu0 0.0
      %1306 = vmatpush1.msra.mxu0 %v1263
      %1307 = vmatprep.subr.mxu0 0.0
      %1308 = vmatpush1.msra.mxu0 %v1264
      %1309 = vmatprep.subr.mxu0 0.0
      %1310 = vmatpush1.msra.mxu0 %v1265
      %1311 = vmatprep.subr.mxu0 0.0
      %1312 = vmatpush1.msra.mxu0 %v1266
      %1313 = vmatprep.subr.mxu0 0.0
      %1314 = vmatpush1.msra.mxu0 %v1267
      %1315 = vmatprep.subr.mxu0 0.0
      %1316 = vmatpush1.msra.mxu0 %v1268
      %1317 = vmatprep.subr.mxu0 0.0
      %1318 = vmatpush1.msra.mxu0 %v1269
      %1319 = vmatprep.subr.mxu0 0.0
      %1320 = vmatpush1.msra.mxu0 %v1270
      %1321 = vmatprep.subr.mxu0 0.0
      %1322 = vmatpush1.msra.mxu0 %v1271
      %1323 = vmatprep.subr.mxu0 0.0
      %1324 = vmatpush1.msra.mxu0 %v1272
      %1325 = vmatprep.subr.mxu0 0.0
      %1326 = vmatpush1.msra.mxu0 %v1273
      %1327 = vmatprep.subr.mxu0 0.0
      %1328 = vmatpush1.msra.mxu0 %v1274
      %1329 = vmatprep.subr.mxu0 0.0
      %1330 = vmatpush1.msra.mxu0 %v1275
      %1331 = vmatprep.subr.mxu0 0.0
      %1332 = vmatpush1.msra.mxu0 %v1276
      %1333 = vmatprep.subr.mxu0 0.0
      %1334 = vmatpush1.msra.mxu0 %v1277
      %1335 = vmatprep.subr.mxu0 0.0
      %1336 = vmatpush1.msra.mxu0 %v1278
      %1337 = vmatprep.subr.mxu0 0.0
      %1338 = vmatpush1.msra.mxu0 %v1279
      %1339 = vmatprep.subr.mxu0 0.0
      %1340 = vmatpush1.msra.mxu0 %v1280
      %1341 = vmatprep.subr.mxu0 0.0
      %1342 = vmatpush1.msra.mxu0 %v1281
      %1343 = vmatprep.subr.mxu0 0.0
      %1344 = vmatpush1.msra.mxu0 0.0
      %1345 = vmatprep.subr.mxu0 0.0
      %1346 = vmatpush1.msra.mxu0 0.0
      %1347 = vmatprep.subr.mxu0 0.0
      %1348 = vmatpush1.msra.mxu0 0.0
      %1349 = vmatprep.subr.mxu0 0.0
      %1350 = vmatpush1.msra.mxu0 0.0
      %1351 = vmatprep.subr.mxu0 0.0
      %1352 = vmatpush1.msra.mxu0 0.0
      %1353 = vmatprep.subr.mxu0 0.0
      %1354 = vmatpush1.msra.mxu0 0.0
      %1355 = vmatprep.subr.mxu0 0.0
      %1356 = vmatpush1.msra.mxu0 0.0
      %1357 = vmatprep.subr.mxu0 0.0
      %1358 = vmatpush1.msra.mxu0 0.0
      %1359 = vmatprep.subr.mxu0 0.0
      %1360 = vmatpush1.msra.mxu0 0.0
      %1361 = vmatprep.subr.mxu0 0.0
      %1362 = vmatpush1.msra.mxu0 0.0
      %1363 = vmatprep.subr.mxu0 0.0
      %1364 = vmatpush1.msra.mxu0 0.0
      %1365 = vmatprep.subr.mxu0 0.0
      %1366 = vmatpush1.msra.mxu0 0.0
      %1367 = vmatprep.mubr.f32.mxu0 %v1299
      %1368 = vmatmul.mubr.f32.gmra.mrb[0].mxu0 %v1289
      %v1369 = vpop.f32.mrb[0].mxu0
      %v1370 = vadd.f32 0.0, %v1369
      %v1371 = vpop.f32.mrb[0].mxu0
      %1372 = vmatprep.mubr.f32.mxu0 %v1301
      %1373 = vmatmul.mubr.f32.gmra.mrb[0].mxu0 %v1294
      %v1374 = vpop.f32.mrb[0].mxu0
      %v1375 = vadd.f32 0.0, %v1374
      %v1376 = vpop.f32.mrb[0].mxu0
      %1377 = vdwg.mxu0
      %v1378 = vadd.f32 %v1249, %v1370
      %v1379 = vadd.f32 %v1254, %v1375
      %v1380 = vld [vmem:[#allocation3] sm:$0xf8]
      %v1381 = vld [vmem:[#allocation3 + $0x8] sm:$0xf8]
      %v1382 = vld [vmem:[#allocation3 + $0x20] sm:$0x7]
      %v1383 = vld [vmem:[#allocation3 + $0x28] sm:$0x7]
      %s1384 = scalar_lea.vmem %s2, 480
      %v1385 = vld [vmem:[%s1384] sm:$0xff]
      %v1386 = vld [vmem:[%s1384 + $0x8] sm:$0xff]
      %v1387 = vld [vmem:[%s1384 + $0x10] sm:$0xff]
      %v1388 = vld [vmem:[%s1384 + $0x18] sm:$0xff]
      %v1389 = vld [vmem:[%s1384 + $0x20] sm:$0xff]
      %v1390 = vld [vmem:[%s1384 + $0x28] sm:$0xff]
      %v1391 = vld [vmem:[%s1384 + $0x30] sm:$0xff]
      %v1392 = vld [vmem:[%s1384 + $0x38] sm:$0xff]
      %v1393 = vld [vmem:[%s1384 + $0x40] sm:$0xff]
      %v1394 = vld [vmem:[%s1384 + $0x48] sm:$0xff]
      %v1395 = vld [vmem:[%s1384 + $0x50] sm:$0xff]
      %v1396 = vld [vmem:[%s1384 + $0x58] sm:$0xff]
      %v1397 = vld [vmem:[%s1384 + $0x60] sm:$0xff]
      %v1398 = vld [vmem:[%s1384 + $0x68] sm:$0xff]
      %v1399 = vld [vmem:[%s1384 + $0x70] sm:$0xff]
      %v1400 = vld [vmem:[%s1384 + $0x78] sm:$0xff]
      %v1401 = vld [vmem:[%s1384 + $0x80] sm:$0xff]
      %v1402 = vld [vmem:[%s1384 + $0x88] sm:$0xff]
      %v1403 = vld [vmem:[%s1384 + $0x90] sm:$0xff]
      %v1404 = vld [vmem:[%s1384 + $0x98] sm:$0xff]
      %vm1409 = vcmask 1044480
      %v1410 = vrot.slane %v1380, 3
      %v1411 = vrot.slane %v1031, 3
      %v1412 = vsel %vm1409, %v1410, %v1411
      %v1413 = vrot.slane %v1381, 3
      %v1414 = vrot.slane %v1032, 3
      %v1415 = vsel %vm1409, %v1413, %v1414
      %v1416 = vrot.slane %v1382, 3
      %v1417 = vsel %vm1409, %v1411, %v1416
      %v1418 = vrot.slane %v1383, 3
      %v1419 = vsel %vm1409, %v1414, %v1418
      %v1422 = vsel %vm1097, %v1415, 0
      %v1424 = vsel %vm1097, %v1419, 0
      %1426 = vmatprep.subr.mxu0 0.0
      %1427 = vmatpush1.msra.mxu0 %v1385
      %1428 = vmatprep.subr.mxu0 0.0
      %1429 = vmatpush1.msra.mxu0 %v1386
      %1430 = vmatprep.subr.mxu0 0.0
      %1431 = vmatpush1.msra.mxu0 %v1387
      %1432 = vmatprep.subr.mxu0 0.0
      %1433 = vmatpush1.msra.mxu0 %v1388
      %1434 = vmatprep.subr.mxu0 0.0
      %1435 = vmatpush1.msra.mxu0 %v1389
      %1436 = vmatprep.subr.mxu0 0.0
      %1437 = vmatpush1.msra.mxu0 %v1390
      %1438 = vmatprep.subr.mxu0 0.0
      %1439 = vmatpush1.msra.mxu0 %v1391
      %1440 = vmatprep.subr.mxu0 0.0
      %1441 = vmatpush1.msra.mxu0 %v1392
      %1442 = vmatprep.subr.mxu0 0.0
      %1443 = vmatpush1.msra.mxu0 %v1393
      %1444 = vmatprep.subr.mxu0 0.0
      %1445 = vmatpush1.msra.mxu0 %v1394
      %1446 = vmatprep.subr.mxu0 0.0
      %1447 = vmatpush1.msra.mxu0 %v1395
      %1448 = vmatprep.subr.mxu0 0.0
      %1449 = vmatpush1.msra.mxu0 %v1396
      %1450 = vmatprep.subr.mxu0 0.0
      %1451 = vmatpush1.msra.mxu0 %v1397
      %1452 = vmatprep.subr.mxu0 0.0
      %1453 = vmatpush1.msra.mxu0 %v1398
      %1454 = vmatprep.subr.mxu0 0.0
      %1455 = vmatpush1.msra.mxu0 %v1399
      %1456 = vmatprep.subr.mxu0 0.0
      %1457 = vmatpush1.msra.mxu0 %v1400
      %1458 = vmatprep.subr.mxu0 0.0
      %1459 = vmatpush1.msra.mxu0 %v1401
      %1460 = vmatprep.subr.mxu0 0.0
      %1461 = vmatpush1.msra.mxu0 %v1402
      %1462 = vmatprep.subr.mxu0 0.0
      %1463 = vmatpush1.msra.mxu0 %v1403
      %1464 = vmatprep.subr.mxu0 0.0
      %1465 = vmatpush1.msra.mxu0 %v1404
      %1466 = vmatprep.subr.mxu0 0.0
      %1467 = vmatpush1.msra.mxu0 0.0
      %1468 = vmatprep.subr.mxu0 0.0
      %1469 = vmatpush1.msra.mxu0 0.0
      %1470 = vmatprep.subr.mxu0 0.0
      %1471 = vmatpush1.msra.mxu0 0.0
      %1472 = vmatprep.subr.mxu0 0.0
      %1473 = vmatpush1.msra.mxu0 0.0
      %1474 = vmatprep.subr.mxu0 0.0
      %1475 = vmatpush1.msra.mxu0 0.0
      %1476 = vmatprep.subr.mxu0 0.0
      %1477 = vmatpush1.msra.mxu0 0.0
      %1478 = vmatprep.subr.mxu0 0.0
      %1479 = vmatpush1.msra.mxu0 0.0
      %1480 = vmatprep.subr.mxu0 0.0
      %1481 = vmatpush1.msra.mxu0 0.0
      %1482 = vmatprep.subr.mxu0 0.0
      %1483 = vmatpush1.msra.mxu0 0.0
      %1484 = vmatprep.subr.mxu0 0.0
      %1485 = vmatpush1.msra.mxu0 0.0
      %1486 = vmatprep.subr.mxu0 0.0
      %1487 = vmatpush1.msra.mxu0 0.0
      %1488 = vmatprep.subr.mxu0 0.0
      %1489 = vmatpush1.msra.mxu0 0.0
      %1490 = vmatprep.mubr.f32.mxu0 %v1422
      %1491 = vmatmul.mubr.f32.gmra.mrb[0].mxu0 %v1412
      %v1492 = vpop.f32.mrb[0].mxu0
      %v1493 = vadd.f32 0.0, %v1492
      %v1494 = vpop.f32.mrb[0].mxu0
      %1495 = vmatprep.mubr.f32.mxu0 %v1424
      %1496 = vmatmul.mubr.f32.gmra.mrb[0].mxu0 %v1417
      %v1497 = vpop.f32.mrb[0].mxu0
      %v1498 = vadd.f32 0.0, %v1497
      %v1499 = vpop.f32.mrb[0].mxu0
      %1500 = vdwg.mxu0
      %v1501 = vadd.f32 %v1378, %v1493
      %v1502 = vadd.f32 %v1379, %v1498
      %v1503 = vld [vmem:[#allocation3] sm:$0xf0]
      %v1504 = vld [vmem:[#allocation3 + $0x8] sm:$0xf0]
      %v1505 = vld [vmem:[#allocation3 + $0x20] sm:$0xf]
      %v1506 = vld [vmem:[#allocation3 + $0x28] sm:$0xf]
      %s1507 = scalar_lea.vmem %s2, 640
      %v1508 = vld [vmem:[%s1507] sm:$0xff]
      %v1509 = vld [vmem:[%s1507 + $0x8] sm:$0xff]
      %v1510 = vld [vmem:[%s1507 + $0x10] sm:$0xff]
      %v1511 = vld [vmem:[%s1507 + $0x18] sm:$0xff]
      %v1512 = vld [vmem:[%s1507 + $0x20] sm:$0xff]
      %v1513 = vld [vmem:[%s1507 + $0x28] sm:$0xff]
      %v1514 = vld [vmem:[%s1507 + $0x30] sm:$0xff]
      %v1515 = vld [vmem:[%s1507 + $0x38] sm:$0xff]
      %v1516 = vld [vmem:[%s1507 + $0x40] sm:$0xff]
      %v1517 = vld [vmem:[%s1507 + $0x48] sm:$0xff]
      %v1518 = vld [vmem:[%s1507 + $0x50] sm:$0xff]
      %v1519 = vld [vmem:[%s1507 + $0x58] sm:$0xff]
      %v1520 = vld [vmem:[%s1507 + $0x60] sm:$0xff]
      %v1521 = vld [vmem:[%s1507 + $0x68] sm:$0xff]
      %v1522 = vld [vmem:[%s1507 + $0x70] sm:$0xff]
      %v1523 = vld [vmem:[%s1507 + $0x78] sm:$0xff]
      %v1524 = vld [vmem:[%s1507 + $0x80] sm:$0xff]
      %v1525 = vld [vmem:[%s1507 + $0x88] sm:$0xff]
      %v1526 = vld [vmem:[%s1507 + $0x90] sm:$0xff]
      %v1527 = vld [vmem:[%s1507 + $0x98] sm:$0xff]
      %vm1532 = vcmask 1043456
      %v1533 = vrot.slane %v1503, 4
      %v1534 = vrot.slane %v1031, 4
      %v1535 = vsel %vm1532, %v1533, %v1534
      %v1536 = vrot.slane %v1504, 4
      %v1537 = vrot.slane %v1032, 4
      %v1538 = vsel %vm1532, %v1536, %v1537
      %v1539 = vrot.slane %v1505, 4
      %v1540 = vsel %vm1532, %v1534, %v1539
      %v1541 = vrot.slane %v1506, 4
      %v1542 = vsel %vm1532, %v1537, %v1541
      %v1545 = vsel %vm1097, %v1538, 0
      %v1547 = vsel %vm1097, %v1542, 0
      %1549 = vmatprep.subr.mxu0 0.0
      %1550 = vmatpush1.msra.mxu0 %v1508
      %1551 = vmatprep.subr.mxu0 0.0
      %1552 = vmatpush1.msra.mxu0 %v1509
      %1553 = vmatprep.subr.mxu0 0.0
      %1554 = vmatpush1.msra.mxu0 %v1510
      %1555 = vmatprep.subr.mxu0 0.0
      %1556 = vmatpush1.msra.mxu0 %v1511
      %1557 = vmatprep.subr.mxu0 0.0
      %1558 = vmatpush1.msra.mxu0 %v1512
      %1559 = vmatprep.subr.mxu0 0.0
      %1560 = vmatpush1.msra.mxu0 %v1513
      %1561 = vmatprep.subr.mxu0 0.0
      %1562 = vmatpush1.msra.mxu0 %v1514
      %1563 = vmatprep.subr.mxu0 0.0
      %1564 = vmatpush1.msra.mxu0 %v1515
      %1565 = vmatprep.subr.mxu0 0.0
      %1566 = vmatpush1.msra.mxu0 %v1516
      %1567 = vmatprep.subr.mxu0 0.0
      %1568 = vmatpush1.msra.mxu0 %v1517
      %1569 = vmatprep.subr.mxu0 0.0
      %1570 = vmatpush1.msra.mxu0 %v1518
      %1571 = vmatprep.subr.mxu0 0.0
      %1572 = vmatpush1.msra.mxu0 %v1519
      %1573 = vmatprep.subr.mxu0 0.0
      %1574 = vmatpush1.msra.mxu0 %v1520
      %1575 = vmatprep.subr.mxu0 0.0
      %1576 = vmatpush1.msra.mxu0 %v1521
      %1577 = vmatprep.subr.mxu0 0.0
      %1578 = vmatpush1.msra.mxu0 %v1522
      %1579 = vmatprep.subr.mxu0 0.0
      %1580 = vmatpush1.msra.mxu0 %v1523
      %1581 = vmatprep.subr.mxu0 0.0
      %1582 = vmatpush1.msra.mxu0 %v1524
      %1583 = vmatprep.subr.mxu0 0.0
      %1584 = vmatpush1.msra.mxu0 %v1525
      %1585 = vmatprep.subr.mxu0 0.0
      %1586 = vmatpush1.msra.mxu0 %v1526
      %1587 = vmatprep.subr.mxu0 0.0
      %1588 = vmatpush1.msra.mxu0 %v1527
      %1589 = vmatprep.subr.mxu0 0.0
      %1590 = vmatpush1.msra.mxu0 0.0
      %1591 = vmatprep.subr.mxu0 0.0
      %1592 = vmatpush1.msra.mxu0 0.0
      %1593 = vmatprep.subr.mxu0 0.0
      %1594 = vmatpush1.msra.mxu0 0.0
      %1595 = vmatprep.subr.mxu0 0.0
      %1596 = vmatpush1.msra.mxu0 0.0
      %1597 = vmatprep.subr.mxu0 0.0
      %1598 = vmatpush1.msra.mxu0 0.0
      %1599 = vmatprep.subr.mxu0 0.0
      %1600 = vmatpush1.msra.mxu0 0.0
      %1601 = vmatprep.subr.mxu0 0.0
      %1602 = vmatpush1.msra.mxu0 0.0
      %1603 = vmatprep.subr.mxu0 0.0
      %1604 = vmatpush1.msra.mxu0 0.0
      %1605 = vmatprep.subr.mxu0 0.0
      %1606 = vmatpush1.msra.mxu0 0.0
      %1607 = vmatprep.subr.mxu0 0.0
      %1608 = vmatpush1.msra.mxu0 0.0
      %1609 = vmatprep.subr.mxu0 0.0
      %1610 = vmatpush1.msra.mxu0 0.0
      %1611 = vmatprep.subr.mxu0 0.0
      %1612 = vmatpush1.msra.mxu0 0.0
      %1613 = vmatprep.mubr.f32.mxu0 %v1545
      %1614 = vmatmul.mubr.f32.gmra.mrb[0].mxu0 %v1535
      %v1615 = vpop.f32.mrb[0].mxu0
      %v1616 = vadd.f32 0.0, %v1615
      %v1617 = vpop.f32.mrb[0].mxu0
      %1618 = vmatprep.mubr.f32.mxu0 %v1547
      %1619 = vmatmul.mubr.f32.gmra.mrb[0].mxu0 %v1540
      %v1620 = vpop.f32.mrb[0].mxu0
      %v1621 = vadd.f32 0.0, %v1620
      %v1622 = vpop.f32.mrb[0].mxu0
      %1623 = vdwg.mxu0
      %v1624 = vadd.f32 %v1501, %v1616
      %v1625 = vadd.f32 %v1502, %v1621
      %1626 = vst [vmem:[%s271] sm:$0xff] %v1624
      %1627 = vst [vmem:[%s271 + $0x8] sm:$0xff] %v1625
      %v1628 = vmul.f32 %v1624, 30.0
      %v1629 = vmul.f32 %v1625, 30.0
      %v1630 = vand.u32 2147483647, %v1628
      %vm1631 = vcmp.le.f32.partialorder %v1630, 0.7853982
      %vm1632 = vcmp.lt.s32.totalorder %v1628, 0
      %v1633 = vand.u32 %v1628, 2139095040
      %v1634 = vshrl.u32 %v1633, 23
      %v1635 = vsub.s32 %v1634, 127
      %v1636 = vand.u32 2147483647, %v1628
      %v1637 = vand.u32 %v1636, 8388607
      %v1638 = vor.u32 %v1637, 8388608
      %v1639 = vsub.s32 0, %v1638
      %v1640 = vadd.s32 %v1635, 1
      %vm1641 = vcmp.gt.s32.totalorder %v1640, 0
      %v1642 = vsel %vm1641, %v1640, 0
      %v1643 = vshrl.u32 %v1642, 5
      %v1644 = vand.u32 %v1642, 31
      %v1645 = vsub.s32 32, %v1644
      %v1646 = vshrl.u32 683565275, %v1645
      %v1647 = vshll.u32 683565275, %v1644
      %v1648 = vshrl.u32 2475754826, %v1645
      %v1649 = vor.u32 %v1647, %v1648
      %v1650 = vshll.u32 2475754826, %v1644
      %v1651 = vshrl.u32 2131351028, %v1645
      %v1652 = vor.u32 %v1650, %v1651
      %v1653 = vshll.u32 2131351028, %v1644
      %v1654 = vshrl.u32 2102212464, %v1645
      %v1655 = vor.u32 %v1653, %v1654
      %v1656 = vshll.u32 2102212464, %v1644
      %v1657 = vshrl.u32 920167782, %v1645
      %v1658 = vor.u32 %v1656, %v1657
      %v1659 = vshll.u32 920167782, %v1644
      %v1660 = vshrl.u32 1326507024, %v1645
      %v1661 = vor.u32 %v1659, %v1660
      %vm1662 = vcmp.lt.s32.totalorder %v1643, 1
      %vm1663 = vcmp.lt.s32.totalorder %v1643, 2
      %vm1664 = vcmp.lt.s32.totalorder %v1643, 3
      %vm1665 = vcmp.lt.s32.totalorder %v1643, 4
      %v1666 = vsel %vm1662, %v1646, %v1649
      %v1667 = vsel %vm1665, %v1655, 2102212464
      %v1668 = vsel %vm1664, %v1652, %v1667
      %v1669 = vsel %vm1663, %v1666, %v1668
      %v1670 = vsel %vm1662, %v1649, %v1652
      %v1671 = vsel %vm1665, %v1658, 920167782
      %v1672 = vsel %vm1664, %v1655, %v1671
      %v1673 = vsel %vm1663, %v1670, %v1672
      %v1674 = vsel %vm1662, %v1652, %v1655
      %v1675 = vsel %vm1665, %v1661, 1326507024
      %v1676 = vsel %vm1664, %v1658, %v1675
      %v1677 = vsel %vm1663, %v1674, %v1676
      %v1678 = vshll.u32 %v1638, 8
      %v1679 = vmul.u32.u64.compose %v1678, %v1677
      %v1680 = vextract.low.u32 %v1679
      %v1681 = vextract.high.u32 %v1679
      %v1682 = vmul.u32.u64.compose %v1678, %v1673
      %v1683 = vextract.low.u32 %v1682
      %v1684 = vextract.high.u32 %v1682
      %v1685 = vmul.u32 %v1678, %v1669
      %v1686 = vadd.s32 %v1681, %v1683
      %vm1687 = vc.u32 %v1681, %v1683
      %v1688 = vadd.s32 %v1684, 1
      %v1689 = vsel %vm1687, %v1688, %v1684
      %v1690 = vadd.s32 %v1685, %v1689
      %v1691 = vadd.s32 %v1690, 536870912
      %v1692 = vshrl.u32 %v1691, 30
      %v1693 = vshll.u32 %v1692, 30
      %v1694 = vsub.s32 %v1690, %v1693
      %vm1695 = vcmp.lt.s32.totalorder %v1694, 0
      %v1696 = vsub.s32 0, %v1694
      %v1697 = vsel %vm1695, %v1696, %v1694
      %v1698 = vclz %v1697
      %v1699 = vsub.s32 %v1698, 2
      %vm1700 = vcmp.gt.s32.totalorder 0, %v1699
      %v1701 = vsel %vm1700, 0, %v1699
      %v1702 = vsub.s32 32, %v1701
      %v1703 = vshll.u32 %v1694, %v1701
      %v1704 = vshrl.u32 %v1686, %v1702
      %v1705 = vor.u32 %v1703, %v1704
      %v1706 = vsub.s32 4294967266, %v1701
      %v1707 = vadd.s32 %v1706, 127
      %v1708 = vshll.u32 %v1707, 23
      %v1709 = vor.u32 4788187, %v1708
      %v1710 = vand.u32 2147483647, %v1709
      %v1712 = vcvt.s32.f32 %v1705
      %v1713 = vmul.f32 %v1712, %v1710
      %v1714 = vxor.u32 %v1713, 2147483648
      %v1715 = vsel %vm1632, %v1714, %v1713
      %v1716 = vsub.s32 4, %v1692
      %v1717 = vsel %vm1632, %v1716, %v1692
      %v1718 = vsel %vm1631, %v1628, %v1715
      %v1719 = vsel %vm1631, 0, %v1717
      %v1720 = vcosq.f32.pop %v1718
      %v1721 = vsinq.f32.pop %v1718
      %vm1722 = vweird.f32 %v1628
      %v1723 = vadd.s32 %v1719, 3
      %v1724 = vand.u32 %v1723, 3
      %vm1725 = vcmp.lt.s32.totalorder %v1724, 2
      %vm1726 = vcmp.eq.s32.totalorder %v1724, 0
      %v1727 = vxor.u32 %v1721, 2147483648
      %v1728 = vsel %vm1726, %v1720, %v1727
      %vm1729 = vcmp.eq.s32.totalorder %v1724, 2
      %v1730 = vxor.u32 %v1720, 2147483648
      %v1731 = vsel %vm1729, %v1730, %v1721
      %v1732 = vsel %vm1725, %v1728, %v1731
      %v1733 = vsel %vm1722, nan, %v1732
      %v1734 = vand.u32 2147483647, %v1629
      %vm1735 = vcmp.le.f32.partialorder %v1734, 0.7853982
      %vm1736 = vcmp.lt.s32.totalorder %v1629, 0
      %v1737 = vand.u32 %v1629, 2139095040
      %v1738 = vshrl.u32 %v1737, 23
      %v1739 = vsub.s32 %v1738, 127
      %v1740 = vand.u32 2147483647, %v1629
      %v1741 = vand.u32 %v1740, 8388607
      %v1742 = vor.u32 %v1741, 8388608
      %v1743 = vsub.s32 0, %v1742
      %v1744 = vadd.s32 %v1739, 1
      %vm1745 = vcmp.gt.s32.totalorder %v1744, 0
      %v1746 = vsel %vm1745, %v1744, 0
      %v1747 = vshrl.u32 %v1746, 5
      %v1748 = vand.u32 %v1746, 31
      %v1749 = vsub.s32 32, %v1748
      %v1750 = vshrl.u32 683565275, %v1749
      %v1751 = vshll.u32 683565275, %v1748
      %v1752 = vshrl.u32 2475754826, %v1749
      %v1753 = vor.u32 %v1751, %v1752
      %v1754 = vshll.u32 2475754826, %v1748
      %v1755 = vshrl.u32 2131351028, %v1749
      %v1756 = vor.u32 %v1754, %v1755
      %v1757 = vshll.u32 2131351028, %v1748
      %v1758 = vshrl.u32 2102212464, %v1749
      %v1759 = vor.u32 %v1757, %v1758
      %v1760 = vshll.u32 2102212464, %v1748
      %v1761 = vshrl.u32 920167782, %v1749
      %v1762 = vor.u32 %v1760, %v1761
      %v1763 = vshll.u32 920167782, %v1748
      %v1764 = vshrl.u32 1326507024, %v1749
      %v1765 = vor.u32 %v1763, %v1764
      %vm1766 = vcmp.lt.s32.totalorder %v1747, 1
      %vm1767 = vcmp.lt.s32.totalorder %v1747, 2
      %vm1768 = vcmp.lt.s32.totalorder %v1747, 3
      %vm1769 = vcmp.lt.s32.totalorder %v1747, 4
      %v1770 = vsel %vm1766, %v1750, %v1753
      %v1771 = vsel %vm1769, %v1759, 2102212464
      %v1772 = vsel %vm1768, %v1756, %v1771
      %v1773 = vsel %vm1767, %v1770, %v1772
      %v1774 = vsel %vm1766, %v1753, %v1756
      %v1775 = vsel %vm1769, %v1762, 920167782
      %v1776 = vsel %vm1768, %v1759, %v1775
      %v1777 = vsel %vm1767, %v1774, %v1776
      %v1778 = vsel %vm1766, %v1756, %v1759
      %v1779 = vsel %vm1769, %v1765, 1326507024
      %v1780 = vsel %vm1768, %v1762, %v1779
      %v1781 = vsel %vm1767, %v1778, %v1780
      %v1782 = vshll.u32 %v1742, 8
      %v1783 = vmul.u32.u64.compose %v1782, %v1781
      %v1784 = vextract.low.u32 %v1783
      %v1785 = vextract.high.u32 %v1783
      %v1786 = vmul.u32.u64.compose %v1782, %v1777
      %v1787 = vextract.low.u32 %v1786
      %v1788 = vextract.high.u32 %v1786
      %v1789 = vmul.u32 %v1782, %v1773
      %v1790 = vadd.s32 %v1785, %v1787
      %vm1791 = vc.u32 %v1785, %v1787
      %v1792 = vadd.s32 %v1788, 1
      %v1793 = vsel %vm1791, %v1792, %v1788
      %v1794 = vadd.s32 %v1789, %v1793
      %v1795 = vadd.s32 %v1794, 536870912
      %v1796 = vshrl.u32 %v1795, 30
      %v1797 = vshll.u32 %v1796, 30
      %v1798 = vsub.s32 %v1794, %v1797
      %vm1799 = vcmp.lt.s32.totalorder %v1798, 0
      %v1800 = vsub.s32 0, %v1798
      %v1801 = vsel %vm1799, %v1800, %v1798
      %v1802 = vclz %v1801
      %v1803 = vsub.s32 %v1802, 2
      %vm1804 = vcmp.gt.s32.totalorder 0, %v1803
      %v1805 = vsel %vm1804, 0, %v1803
      %v1806 = vsub.s32 32, %v1805
      %v1807 = vshll.u32 %v1798, %v1805
      %v1808 = vshrl.u32 %v1790, %v1806
      %v1809 = vor.u32 %v1807, %v1808
      %v1810 = vsub.s32 4294967266, %v1805
      %v1811 = vadd.s32 %v1810, 127
      %v1812 = vshll.u32 %v1811, 23
      %v1813 = vor.u32 4788187, %v1812
      %v1814 = vand.u32 2147483647, %v1813
      %v1816 = vcvt.s32.f32 %v1809
      %v1817 = vmul.f32 %v1816, %v1814
      %v1818 = vxor.u32 %v1817, 2147483648
      %v1819 = vsel %vm1736, %v1818, %v1817
      %v1820 = vsub.s32 4, %v1796
      %v1821 = vsel %vm1736, %v1820, %v1796
      %v1822 = vsel %vm1735, %v1629, %v1819
      %v1823 = vsel %vm1735, 0, %v1821
      %v1824 = vcosq.f32.pop %v1822
      %v1825 = vsinq.f32.pop %v1822
      %vm1826 = vweird.f32 %v1629
      %v1827 = vadd.s32 %v1823, 3
      %v1828 = vand.u32 %v1827, 3
      %vm1829 = vcmp.lt.s32.totalorder %v1828, 2
      %vm1830 = vcmp.eq.s32.totalorder %v1828, 0
      %v1831 = vxor.u32 %v1825, 2147483648
      %v1832 = vsel %vm1830, %v1824, %v1831
      %vm1833 = vcmp.eq.s32.totalorder %v1828, 2
      %v1834 = vxor.u32 %v1824, 2147483648
      %v1835 = vsel %vm1833, %v1834, %v1825
      %v1836 = vsel %vm1829, %v1832, %v1835
      %v1837 = vsel %vm1826, nan, %v1836
      %1838 = vst [vmem:[#allocation4] sm:$0x3] 0.0
      %1839 = vst.msk [vmem:[#allocation4 + $0x8] sm:$0x3] %vm988, 0.0
      %1840 = vst [vmem:[#allocation4 + $0x20] sm:$0xc] 0.0
      %1841 = vst.msk [vmem:[#allocation4 + $0x28] sm:$0xc] %vm991, 0.0
      %1842 = vst.msk [vmem:[#allocation4] sm:$0xfc] %vm993, 0.0
      %1843 = vst.msk [vmem:[#allocation4 + $0x10] sm:$0xff] %vm995, 0.0
      %1844 = vst.msk [vmem:[#allocation4 + $0x20] sm:$0x3] %vm997, 0.0
      %1845 = vst.msk [vmem:[#allocation4 + $0x8] sm:$0xfc] %vm999, 0.0
      %1846 = vst.msk [vmem:[#allocation4 + $0x18] sm:$0xff] %vm1001, 0.0
      %1847 = vst.msk [vmem:[#allocation4 + $0x28] sm:$0x3] %vm1003, 0.0
      %v1850 = vrot.slane %v1733, 6
      %v1851 = vrot.slane %v1837, 6
      %v1852 = vsel %vm1007, %v1850, %v1851
      %1853 = vrot.lane.b32.xlu0 %v1850, 16
      %v1854 = vpop.permute.xlu0 %1853
      %1855 = vrot.lane.b32.xlu0 %v1852, 16
      %v1856 = vpop.permute.xlu0 %1855
      %1857 = vrot.lane.b32.xlu0 %v1851, 16
      %v1858 = vpop.permute.xlu0 %1857
      %1862 = vst.msk [vmem:[#allocation4] sm:$0xfc] %vm1020, %v1854
      %1863 = vst.msk [vmem:[#allocation4 + $0x8] sm:$0xfc] %vm993, %v1854
      %1864 = vst.msk [vmem:[#allocation4 + $0x10] sm:$0xff] %vm1023, %v1856
      %1865 = vst.msk [vmem:[#allocation4 + $0x18] sm:$0xff] %vm995, %v1856
      %1866 = vst.msk [vmem:[#allocation4 + $0x20] sm:$0x3] %vm1026, %v1858
      %1867 = vst.msk [vmem:[#allocation4 + $0x28] sm:$0x3] %vm997, %v1858
      %v1868 = vld [vmem:[#allocation4] sm:$0xff]
      %v1869 = vld [vmem:[#allocation4 + $0x8] sm:$0xff]
      %v1870 = vld [vmem:[#allocation4 + $0x10] sm:$0xff]
      %v1871 = vld [vmem:[#allocation4 + $0x18] sm:$0xff]
      %v1872 = vld [vmem:[%s3] sm:$0xff]
      %v1873 = vld [vmem:[%s3 + $0x8] sm:$0xff]
      %v1874 = vld [vmem:[%s3 + $0x10] sm:$0xff]
      %v1875 = vld [vmem:[%s3 + $0x18] sm:$0xff]
      %v1876 = vld [vmem:[%s3 + $0x20] sm:$0xff]
      %v1877 = vld [vmem:[%s3 + $0x28] sm:$0xff]
      %v1878 = vld [vmem:[%s3 + $0x30] sm:$0xff]
      %v1879 = vld [vmem:[%s3 + $0x38] sm:$0xff]
      %v1880 = vld [vmem:[%s3 + $0x40] sm:$0xff]
      %v1881 = vld [vmem:[%s3 + $0x48] sm:$0xff]
      %v1882 = vld [vmem:[%s3 + $0x50] sm:$0xff]
      %v1883 = vld [vmem:[%s3 + $0x58] sm:$0xff]
      %v1884 = vld [vmem:[%s3 + $0x60] sm:$0xff]
      %v1885 = vld [vmem:[%s3 + $0x68] sm:$0xff]
      %v1886 = vld [vmem:[%s3 + $0x70] sm:$0xff]
      %v1887 = vld [vmem:[%s3 + $0x78] sm:$0xff]
      %v1888 = vld [vmem:[%s3 + $0x80] sm:$0xff]
      %v1889 = vld [vmem:[%s3 + $0x88] sm:$0xff]
      %v1890 = vld [vmem:[%s3 + $0x90] sm:$0xff]
      %v1891 = vld [vmem:[%s3 + $0x98] sm:$0xff]
      %v1892 = vld [vmem:[#allocation4] sm:$0xfe]
      %v1893 = vld [vmem:[#allocation4 + $0x8] sm:$0xfe]
      %v1894 = vld [vmem:[#allocation4 + $0x20] sm:$0x1]
      %v1895 = vld [vmem:[#allocation4 + $0x28] sm:$0x1]
      %s1896 = scalar_lea.vmem %s3, 160
      %v1897 = vld [vmem:[%s1896] sm:$0xff]
      %v1898 = vld [vmem:[%s1896 + $0x8] sm:$0xff]
      %v1899 = vld [vmem:[%s1896 + $0x10] sm:$0xff]
      %v1900 = vld [vmem:[%s1896 + $0x18] sm:$0xff]
      %v1901 = vld [vmem:[%s1896 + $0x20] sm:$0xff]
      %v1902 = vld [vmem:[%s1896 + $0x28] sm:$0xff]
      %v1903 = vld [vmem:[%s1896 + $0x30] sm:$0xff]
      %v1904 = vld [vmem:[%s1896 + $0x38] sm:$0xff]
      %v1905 = vld [vmem:[%s1896 + $0x40] sm:$0xff]
      %v1906 = vld [vmem:[%s1896 + $0x48] sm:$0xff]
      %v1907 = vld [vmem:[%s1896 + $0x50] sm:$0xff]
      %v1908 = vld [vmem:[%s1896 + $0x58] sm:$0xff]
      %v1909 = vld [vmem:[%s1896 + $0x60] sm:$0xff]
      %v1910 = vld [vmem:[%s1896 + $0x68] sm:$0xff]
      %v1911 = vld [vmem:[%s1896 + $0x70] sm:$0xff]
      %v1912 = vld [vmem:[%s1896 + $0x78] sm:$0xff]
      %v1913 = vld [vmem:[%s1896 + $0x80] sm:$0xff]
      %v1914 = vld [vmem:[%s1896 + $0x88] sm:$0xff]
      %v1915 = vld [vmem:[%s1896 + $0x90] sm:$0xff]
      %v1916 = vld [vmem:[%s1896 + $0x98] sm:$0xff]
      %v1923 = vrot.slane %v1892, 1
      %v1924 = vrot.slane %v1870, 1
      %v1925 = vsel %vm1084, %v1923, %v1924
      %v1926 = vrot.slane %v1893, 1
      %v1927 = vrot.slane %v1871, 1
      %v1928 = vsel %vm1084, %v1926, %v1927
      %v1929 = vrot.slane %v1894, 1
      %v1930 = vsel %vm1084, %v1924, %v1929
      %v1931 = vrot.slane %v1895, 1
      %v1932 = vsel %vm1084, %v1927, %v1931
      %v1935 = vsel %vm1097, %v1928, 0
      %v1937 = vsel %vm1097, %v1932, 0
      %1939 = vmatprep.subr.mxu0 0.0
      %1940 = vmatpush1.msra.mxu0 %v1897
      %1941 = vmatprep.subr.mxu0 0.0
      %1942 = vmatpush1.msra.mxu0 %v1898
      %1943 = vmatprep.subr.mxu0 0.0
      %1944 = vmatpush1.msra.mxu0 %v1899
      %1945 = vmatprep.subr.mxu0 0.0
      %1946 = vmatpush1.msra.mxu0 %v1900
      %1947 = vmatprep.subr.mxu0 0.0
      %1948 = vmatpush1.msra.mxu0 %v1901
      %1949 = vmatprep.subr.mxu0 0.0
      %1950 = vmatpush1.msra.mxu0 %v1902
      %1951 = vmatprep.subr.mxu0 0.0
      %1952 = vmatpush1.msra.mxu0 %v1903
      %1953 = vmatprep.subr.mxu0 0.0
      %1954 = vmatpush1.msra.mxu0 %v1904
      %1955 = vmatprep.subr.mxu0 0.0
      %1956 = vmatpush1.msra.mxu0 %v1905
      %1957 = vmatprep.subr.mxu0 0.0
      %1958 = vmatpush1.msra.mxu0 %v1906
      %1959 = vmatprep.subr.mxu0 0.0
      %1960 = vmatpush1.msra.mxu0 %v1907
      %1961 = vmatprep.subr.mxu0 0.0
      %1962 = vmatpush1.msra.mxu0 %v1908
      %1963 = vmatprep.subr.mxu0 0.0
      %1964 = vmatpush1.msra.mxu0 %v1909
      %1965 = vmatprep.subr.mxu0 0.0
      %1966 = vmatpush1.msra.mxu0 %v1910
      %1967 = vmatprep.subr.mxu0 0.0
      %1968 = vmatpush1.msra.mxu0 %v1911
      %1969 = vmatprep.subr.mxu0 0.0
      %1970 = vmatpush1.msra.mxu0 %v1912
      %1971 = vmatprep.subr.mxu0 0.0
      %1972 = vmatpush1.msra.mxu0 %v1913
      %1973 = vmatprep.subr.mxu0 0.0
      %1974 = vmatpush1.msra.mxu0 %v1914
      %1975 = vmatprep.subr.mxu0 0.0
      %1976 = vmatpush1.msra.mxu0 %v1915
      %1977 = vmatprep.subr.mxu0 0.0
      %1978 = vmatpush1.msra.mxu0 %v1916
      %1979 = vmatprep.subr.mxu0 0.0
      %1980 = vmatpush1.msra.mxu0 0.0
      %1981 = vmatprep.subr.mxu0 0.0
      %1982 = vmatpush1.msra.mxu0 0.0
      %1983 = vmatprep.subr.mxu0 0.0
      %1984 = vmatpush1.msra.mxu0 0.0
      %1985 = vmatprep.subr.mxu0 0.0
      %1986 = vmatpush1.msra.mxu0 0.0
      %1987 = vmatprep.subr.mxu0 0.0
      %1988 = vmatpush1.msra.mxu0 0.0
      %1989 = vmatprep.subr.mxu0 0.0
      %1990 = vmatpush1.msra.mxu0 0.0
      %1991 = vmatprep.subr.mxu0 0.0
      %1992 = vmatpush1.msra.mxu0 0.0
      %1993 = vmatprep.subr.mxu0 0.0
      %1994 = vmatpush1.msra.mxu0 0.0
      %1995 = vmatprep.subr.mxu0 0.0
      %1996 = vmatpush1.msra.mxu0 0.0
      %1997 = vmatprep.subr.mxu0 0.0
      %1998 = vmatpush1.msra.mxu0 0.0
      %1999 = vmatprep.subr.mxu0 0.0
      %2000 = vmatpush1.msra.mxu0 0.0
      %2001 = vmatprep.subr.mxu0 0.0
      %2002 = vmatpush1.msra.mxu0 0.0
      %2003 = vmatprep.mubr.f32.mxu0 %v1935
      %2004 = vmatmul.mubr.f32.gmra.mrb[0].mxu0 %v1925
      %v2005 = vpop.f32.mrb[0].mxu0
      %v2006 = vadd.f32 0.0, %v2005
      %v2007 = vpop.f32.mrb[0].mxu0
      %2008 = vmatprep.mubr.f32.mxu0 %v1937
      %2009 = vmatmul.mubr.f32.gmra.mrb[0].mxu0 %v1930
      %v2010 = vpop.f32.mrb[0].mxu0
      %v2011 = vadd.f32 0.0, %v2010
      %v2012 = vpop.f32.mrb[0].mxu0
      %2013 = vdwg.mxu0
      %v2015 = vsel %vm1097, %v1869, 0
      %v2017 = vsel %vm1097, %v1871, 0
      %2019 = vmatprep.subr.mxu0 0.0
      %2020 = vmatpush1.msra.mxu0 %v1872
      %2021 = vmatprep.subr.mxu0 0.0
      %2022 = vmatpush1.msra.mxu0 %v1873
      %2023 = vmatprep.subr.mxu0 0.0
      %2024 = vmatpush1.msra.mxu0 %v1874
      %2025 = vmatprep.subr.mxu0 0.0
      %2026 = vmatpush1.msra.mxu0 %v1875
      %2027 = vmatprep.subr.mxu0 0.0
      %2028 = vmatpush1.msra.mxu0 %v1876
      %2029 = vmatprep.subr.mxu0 0.0
      %2030 = vmatpush1.msra.mxu0 %v1877
      %2031 = vmatprep.subr.mxu0 0.0
      %2032 = vmatpush1.msra.mxu0 %v1878
      %2033 = vmatprep.subr.mxu0 0.0
      %2034 = vmatpush1.msra.mxu0 %v1879
      %2035 = vmatprep.subr.mxu0 0.0
      %2036 = vmatpush1.msra.mxu0 %v1880
      %2037 = vmatprep.subr.mxu0 0.0
      %2038 = vmatpush1.msra.mxu0 %v1881
      %2039 = vmatprep.subr.mxu0 0.0
      %2040 = vmatpush1.msra.mxu0 %v1882
      %2041 = vmatprep.subr.mxu0 0.0
      %2042 = vmatpush1.msra.mxu0 %v1883
      %2043 = vmatprep.subr.mxu0 0.0
      %2044 = vmatpush1.msra.mxu0 %v1884
      %2045 = vmatprep.subr.mxu0 0.0
      %2046 = vmatpush1.msra.mxu0 %v1885
      %2047 = vmatprep.subr.mxu0 0.0
      %2048 = vmatpush1.msra.mxu0 %v1886
      %2049 = vmatprep.subr.mxu0 0.0
      %2050 = vmatpush1.msra.mxu0 %v1887
      %2051 = vmatprep.subr.mxu0 0.0
      %2052 = vmatpush1.msra.mxu0 %v1888
      %2053 = vmatprep.subr.mxu0 0.0
      %2054 = vmatpush1.msra.mxu0 %v1889
      %2055 = vmatprep.subr.mxu0 0.0
      %2056 = vmatpush1.msra.mxu0 %v1890
      %2057 = vmatprep.subr.mxu0 0.0
      %2058 = vmatpush1.msra.mxu0 %v1891
      %2059 = vmatprep.subr.mxu0 0.0
      %2060 = vmatpush1.msra.mxu0 0.0
      %2061 = vmatprep.subr.mxu0 0.0
      %2062 = vmatpush1.msra.mxu0 0.0
      %2063 = vmatprep.subr.mxu0 0.0
      %2064 = vmatpush1.msra.mxu0 0.0
      %2065 = vmatprep.subr.mxu0 0.0
      %2066 = vmatpush1.msra.mxu0 0.0
      %2067 = vmatprep.subr.mxu0 0.0
      %2068 = vmatpush1.msra.mxu0 0.0
      %2069 = vmatprep.subr.mxu0 0.0
      %2070 = vmatpush1.msra.mxu0 0.0
      %2071 = vmatprep.subr.mxu0 0.0
      %2072 = vmatpush1.msra.mxu0 0.0
      %2073 = vmatprep.subr.mxu0 0.0
      %2074 = vmatpush1.msra.mxu0 0.0
      %2075 = vmatprep.subr.mxu0 0.0
      %2076 = vmatpush1.msra.mxu0 0.0
      %2077 = vmatprep.subr.mxu0 0.0
      %2078 = vmatpush1.msra.mxu0 0.0
      %2079 = vmatprep.subr.mxu0 0.0
      %2080 = vmatpush1.msra.mxu0 0.0
      %2081 = vmatprep.subr.mxu0 0.0
      %2082 = vmatpush1.msra.mxu0 0.0
      %2083 = vmatprep.mubr.f32.mxu0 %v2015
      %2084 = vmatmul.mubr.f32.gmra.mrb[0].mxu0 %v1868
      %v2085 = vpop.f32.mrb[0].mxu0
      %v2086 = vadd.f32 %v2006, %v2085
      %v2087 = vpop.f32.mrb[0].mxu0
      %2088 = vmatprep.mubr.f32.mxu0 %v2017
      %2089 = vmatmul.mubr.f32.gmra.mrb[0].mxu0 %v1870
      %v2090 = vpop.f32.mrb[0].mxu0
      %v2091 = vadd.f32 %v2011, %v2090
      %v2092 = vpop.f32.mrb[0].mxu0
      %2093 = vdwg.mxu0
      %v2094 = vld [vmem:[#allocation4] sm:$0xfc]
      %v2095 = vld [vmem:[#allocation4 + $0x8] sm:$0xfc]
      %v2096 = vld [vmem:[#allocation4 + $0x20] sm:$0x3]
      %v2097 = vld [vmem:[#allocation4 + $0x28] sm:$0x3]
      %s2098 = scalar_lea.vmem %s3, 320
      %v2099 = vld [vmem:[%s2098] sm:$0xff]
      %v2100 = vld [vmem:[%s2098 + $0x8] sm:$0xff]
      %v2101 = vld [vmem:[%s2098 + $0x10] sm:$0xff]
      %v2102 = vld [vmem:[%s2098 + $0x18] sm:$0xff]
      %v2103 = vld [vmem:[%s2098 + $0x20] sm:$0xff]
      %v2104 = vld [vmem:[%s2098 + $0x28] sm:$0xff]
      %v2105 = vld [vmem:[%s2098 + $0x30] sm:$0xff]
      %v2106 = vld [vmem:[%s2098 + $0x38] sm:$0xff]
      %v2107 = vld [vmem:[%s2098 + $0x40] sm:$0xff]
      %v2108 = vld [vmem:[%s2098 + $0x48] sm:$0xff]
      %v2109 = vld [vmem:[%s2098 + $0x50] sm:$0xff]
      %v2110 = vld [vmem:[%s2098 + $0x58] sm:$0xff]
      %v2111 = vld [vmem:[%s2098 + $0x60] sm:$0xff]
      %v2112 = vld [vmem:[%s2098 + $0x68] sm:$0xff]
      %v2113 = vld [vmem:[%s2098 + $0x70] sm:$0xff]
      %v2114 = vld [vmem:[%s2098 + $0x78] sm:$0xff]
      %v2115 = vld [vmem:[%s2098 + $0x80] sm:$0xff]
      %v2116 = vld [vmem:[%s2098 + $0x88] sm:$0xff]
      %v2117 = vld [vmem:[%s2098 + $0x90] sm:$0xff]
      %v2118 = vld [vmem:[%s2098 + $0x98] sm:$0xff]
      %v2123 = vrot.slane %v2094, 2
      %v2124 = vrot.slane %v1870, 2
      %v2125 = vsel %vm1286, %v2123, %v2124
      %v2126 = vrot.slane %v2095, 2
      %v2127 = vrot.slane %v1871, 2
      %v2128 = vsel %vm1286, %v2126, %v2127
      %v2129 = vrot.slane %v2096, 2
      %v2130 = vsel %vm1286, %v2124, %v2129
      %v2131 = vrot.slane %v2097, 2
      %v2132 = vsel %vm1286, %v2127, %v2131
      %v2135 = vsel %vm1097, %v2128, 0
      %v2137 = vsel %vm1097, %v2132, 0
      %2139 = vmatprep.subr.mxu0 0.0
      %2140 = vmatpush1.msra.mxu0 %v2099
      %2141 = vmatprep.subr.mxu0 0.0
      %2142 = vmatpush1.msra.mxu0 %v2100
      %2143 = vmatprep.subr.mxu0 0.0
      %2144 = vmatpush1.msra.mxu0 %v2101
      %2145 = vmatprep.subr.mxu0 0.0
      %2146 = vmatpush1.msra.mxu0 %v2102
      %2147 = vmatprep.subr.mxu0 0.0
      %2148 = vmatpush1.msra.mxu0 %v2103
      %2149 = vmatprep.subr.mxu0 0.0
      %2150 = vmatpush1.msra.mxu0 %v2104
      %2151 = vmatprep.subr.mxu0 0.0
      %2152 = vmatpush1.msra.mxu0 %v2105
      %2153 = vmatprep.subr.mxu0 0.0
      %2154 = vmatpush1.msra.mxu0 %v2106
      %2155 = vmatprep.subr.mxu0 0.0
      %2156 = vmatpush1.msra.mxu0 %v2107
      %2157 = vmatprep.subr.mxu0 0.0
      %2158 = vmatpush1.msra.mxu0 %v2108
      %2159 = vmatprep.subr.mxu0 0.0
      %2160 = vmatpush1.msra.mxu0 %v2109
      %2161 = vmatprep.subr.mxu0 0.0
      %2162 = vmatpush1.msra.mxu0 %v2110
      %2163 = vmatprep.subr.mxu0 0.0
      %2164 = vmatpush1.msra.mxu0 %v2111
      %2165 = vmatprep.subr.mxu0 0.0
      %2166 = vmatpush1.msra.mxu0 %v2112
      %2167 = vmatprep.subr.mxu0 0.0
      %2168 = vmatpush1.msra.mxu0 %v2113
      %2169 = vmatprep.subr.mxu0 0.0
      %2170 = vmatpush1.msra.mxu0 %v2114
      %2171 = vmatprep.subr.mxu0 0.0
      %2172 = vmatpush1.msra.mxu0 %v2115
      %2173 = vmatprep.subr.mxu0 0.0
      %2174 = vmatpush1.msra.mxu0 %v2116
      %2175 = vmatprep.subr.mxu0 0.0
      %2176 = vmatpush1.msra.mxu0 %v2117
      %2177 = vmatprep.subr.mxu0 0.0
      %2178 = vmatpush1.msra.mxu0 %v2118
      %2179 = vmatprep.subr.mxu0 0.0
      %2180 = vmatpush1.msra.mxu0 0.0
      %2181 = vmatprep.subr.mxu0 0.0
      %2182 = vmatpush1.msra.mxu0 0.0
      %2183 = vmatprep.subr.mxu0 0.0
      %2184 = vmatpush1.msra.mxu0 0.0
      %2185 = vmatprep.subr.mxu0 0.0
      %2186 = vmatpush1.msra.mxu0 0.0
      %2187 = vmatprep.subr.mxu0 0.0
      %2188 = vmatpush1.msra.mxu0 0.0
      %2189 = vmatprep.subr.mxu0 0.0
      %2190 = vmatpush1.msra.mxu0 0.0
      %2191 = vmatprep.subr.mxu0 0.0
      %2192 = vmatpush1.msra.mxu0 0.0
      %2193 = vmatprep.subr.mxu0 0.0
      %2194 = vmatpush1.msra.mxu0 0.0
      %2195 = vmatprep.subr.mxu0 0.0
      %2196 = vmatpush1.msra.mxu0 0.0
      %2197 = vmatprep.subr.mxu0 0.0
      %2198 = vmatpush1.msra.mxu0 0.0
      %2199 = vmatprep.subr.mxu0 0.0
      %2200 = vmatpush1.msra.mxu0 0.0
      %2201 = vmatprep.subr.mxu0 0.0
      %2202 = vmatpush1.msra.mxu0 0.0
      %2203 = vmatprep.mubr.f32.mxu0 %v2135
      %2204 = vmatmul.mubr.f32.gmra.mrb[0].mxu0 %v2125
      %v2205 = vpop.f32.mrb[0].mxu0
      %v2206 = vadd.f32 0.0, %v2205
      %v2207 = vpop.f32.mrb[0].mxu0
      %2208 = vmatprep.mubr.f32.mxu0 %v2137
      %2209 = vmatmul.mubr.f32.gmra.mrb[0].mxu0 %v2130
      %v2210 = vpop.f32.mrb[0].mxu0
      %v2211 = vadd.f32 0.0, %v2210
      %v2212 = vpop.f32.mrb[0].mxu0
      %2213 = vdwg.mxu0
      %v2214 = vadd.f32 %v2086, %v2206
      %v2215 = vadd.f32 %v2091, %v2211
      %v2216 = vld [vmem:[#allocation4] sm:$0xf8]
      %v2217 = vld [vmem:[#allocation4 + $0x8] sm:$0xf8]
      %v2218 = vld [vmem:[#allocation4 + $0x20] sm:$0x7]
      %v2219 = vld [vmem:[#allocation4 + $0x28] sm:$0x7]
      %s2220 = scalar_lea.vmem %s3, 480
      %v2221 = vld [vmem:[%s2220] sm:$0xff]
      %v2222 = vld [vmem:[%s2220 + $0x8] sm:$0xff]
      %v2223 = vld [vmem:[%s2220 + $0x10] sm:$0xff]
      %v2224 = vld [vmem:[%s2220 + $0x18] sm:$0xff]
      %v2225 = vld [vmem:[%s2220 + $0x20] sm:$0xff]
      %v2226 = vld [vmem:[%s2220 + $0x28] sm:$0xff]
      %v2227 = vld [vmem:[%s2220 + $0x30] sm:$0xff]
      %v2228 = vld [vmem:[%s2220 + $0x38] sm:$0xff]
      %v2229 = vld [vmem:[%s2220 + $0x40] sm:$0xff]
      %v2230 = vld [vmem:[%s2220 + $0x48] sm:$0xff]
      %v2231 = vld [vmem:[%s2220 + $0x50] sm:$0xff]
      %v2232 = vld [vmem:[%s2220 + $0x58] sm:$0xff]
      %v2233 = vld [vmem:[%s2220 + $0x60] sm:$0xff]
      %v2234 = vld [vmem:[%s2220 + $0x68] sm:$0xff]
      %v2235 = vld [vmem:[%s2220 + $0x70] sm:$0xff]
      %v2236 = vld [vmem:[%s2220 + $0x78] sm:$0xff]
      %v2237 = vld [vmem:[%s2220 + $0x80] sm:$0xff]
      %v2238 = vld [vmem:[%s2220 + $0x88] sm:$0xff]
      %v2239 = vld [vmem:[%s2220 + $0x90] sm:$0xff]
      %v2240 = vld [vmem:[%s2220 + $0x98] sm:$0xff]
      %v2245 = vrot.slane %v2216, 3
      %v2246 = vrot.slane %v1870, 3
      %v2247 = vsel %vm1409, %v2245, %v2246
      %v2248 = vrot.slane %v2217, 3
      %v2249 = vrot.slane %v1871, 3
      %v2250 = vsel %vm1409, %v2248, %v2249
      %v2251 = vrot.slane %v2218, 3
      %v2252 = vsel %vm1409, %v2246, %v2251
      %v2253 = vrot.slane %v2219, 3
      %v2254 = vsel %vm1409, %v2249, %v2253
      %v2257 = vsel %vm1097, %v2250, 0
      %v2259 = vsel %vm1097, %v2254, 0
      %2261 = vmatprep.subr.mxu0 0.0
      %2262 = vmatpush1.msra.mxu0 %v2221
      %2263 = vmatprep.subr.mxu0 0.0
      %2264 = vmatpush1.msra.mxu0 %v2222
      %2265 = vmatprep.subr.mxu0 0.0
      %2266 = vmatpush1.msra.mxu0 %v2223
      %2267 = vmatprep.subr.mxu0 0.0
      %2268 = vmatpush1.msra.mxu0 %v2224
      %2269 = vmatprep.subr.mxu0 0.0
      %2270 = vmatpush1.msra.mxu0 %v2225
      %2271 = vmatprep.subr.mxu0 0.0
      %2272 = vmatpush1.msra.mxu0 %v2226
      %2273 = vmatprep.subr.mxu0 0.0
      %2274 = vmatpush1.msra.mxu0 %v2227
      %2275 = vmatprep.subr.mxu0 0.0
      %2276 = vmatpush1.msra.mxu0 %v2228
      %2277 = vmatprep.subr.mxu0 0.0
      %2278 = vmatpush1.msra.mxu0 %v2229
      %2279 = vmatprep.subr.mxu0 0.0
      %2280 = vmatpush1.msra.mxu0 %v2230
      %2281 = vmatprep.subr.mxu0 0.0
      %2282 = vmatpush1.msra.mxu0 %v2231
      %2283 = vmatprep.subr.mxu0 0.0
      %2284 = vmatpush1.msra.mxu0 %v2232
      %2285 = vmatprep.subr.mxu0 0.0
      %2286 = vmatpush1.msra.mxu0 %v2233
      %2287 = vmatprep.subr.mxu0 0.0
      %2288 = vmatpush1.msra.mxu0 %v2234
      %2289 = vmatprep.subr.mxu0 0.0
      %2290 = vmatpush1.msra.mxu0 %v2235
      %2291 = vmatprep.subr.mxu0 0.0
      %2292 = vmatpush1.msra.mxu0 %v2236
      %2293 = vmatprep.subr.mxu0 0.0
      %2294 = vmatpush1.msra.mxu0 %v2237
      %2295 = vmatprep.subr.mxu0 0.0
      %2296 = vmatpush1.msra.mxu0 %v2238
      %2297 = vmatprep.subr.mxu0 0.0
      %2298 = vmatpush1.msra.mxu0 %v2239
      %2299 = vmatprep.subr.mxu0 0.0
      %2300 = vmatpush1.msra.mxu0 %v2240
      %2301 = vmatprep.subr.mxu0 0.0
      %2302 = vmatpush1.msra.mxu0 0.0
      %2303 = vmatprep.subr.mxu0 0.0
      %2304 = vmatpush1.msra.mxu0 0.0
      %2305 = vmatprep.subr.mxu0 0.0
      %2306 = vmatpush1.msra.mxu0 0.0
      %2307 = vmatprep.subr.mxu0 0.0
      %2308 = vmatpush1.msra.mxu0 0.0
      %2309 = vmatprep.subr.mxu0 0.0
      %2310 = vmatpush1.msra.mxu0 0.0
      %2311 = vmatprep.subr.mxu0 0.0
      %2312 = vmatpush1.msra.mxu0 0.0
      %2313 = vmatprep.subr.mxu0 0.0
      %2314 = vmatpush1.msra.mxu0 0.0
      %2315 = vmatprep.subr.mxu0 0.0
      %2316 = vmatpush1.msra.mxu0 0.0
      %2317 = vmatprep.subr.mxu0 0.0
      %2318 = vmatpush1.msra.mxu0 0.0
      %2319 = vmatprep.subr.mxu0 0.0
      %2320 = vmatpush1.msra.mxu0 0.0
      %2321 = vmatprep.subr.mxu0 0.0
      %2322 = vmatpush1.msra.mxu0 0.0
      %2323 = vmatprep.subr.mxu0 0.0
      %2324 = vmatpush1.msra.mxu0 0.0
      %2325 = vmatprep.mubr.f32.mxu0 %v2257
      %2326 = vmatmul.mubr.f32.gmra.mrb[0].mxu0 %v2247
      %v2327 = vpop.f32.mrb[0].mxu0
      %v2328 = vadd.f32 0.0, %v2327
      %v2329 = vpop.f32.mrb[0].mxu0
      %2330 = vmatprep.mubr.f32.mxu0 %v2259
      %2331 = vmatmul.mubr.f32.gmra.mrb[0].mxu0 %v2252
      %v2332 = vpop.f32.mrb[0].mxu0
      %v2333 = vadd.f32 0.0, %v2332
      %v2334 = vpop.f32.mrb[0].mxu0
      %2335 = vdwg.mxu0
      %v2336 = vadd.f32 %v2214, %v2328
      %v2337 = vadd.f32 %v2215, %v2333
      %v2338 = vld [vmem:[#allocation4] sm:$0xf0]
      %v2339 = vld [vmem:[#allocation4 + $0x8] sm:$0xf0]
      %v2340 = vld [vmem:[#allocation4 + $0x20] sm:$0xf]
      %v2341 = vld [vmem:[#allocation4 + $0x28] sm:$0xf]
      %s2342 = scalar_lea.vmem %s3, 640
      %v2343 = vld [vmem:[%s2342] sm:$0xff]
      %v2344 = vld [vmem:[%s2342 + $0x8] sm:$0xff]
      %v2345 = vld [vmem:[%s2342 + $0x10] sm:$0xff]
      %v2346 = vld [vmem:[%s2342 + $0x18] sm:$0xff]
      %v2347 = vld [vmem:[%s2342 + $0x20] sm:$0xff]
      %v2348 = vld [vmem:[%s2342 + $0x28] sm:$0xff]
      %v2349 = vld [vmem:[%s2342 + $0x30] sm:$0xff]
      %v2350 = vld [vmem:[%s2342 + $0x38] sm:$0xff]
      %v2351 = vld [vmem:[%s2342 + $0x40] sm:$0xff]
      %v2352 = vld [vmem:[%s2342 + $0x48] sm:$0xff]
      %v2353 = vld [vmem:[%s2342 + $0x50] sm:$0xff]
      %v2354 = vld [vmem:[%s2342 + $0x58] sm:$0xff]
      %v2355 = vld [vmem:[%s2342 + $0x60] sm:$0xff]
      %v2356 = vld [vmem:[%s2342 + $0x68] sm:$0xff]
      %v2357 = vld [vmem:[%s2342 + $0x70] sm:$0xff]
      %v2358 = vld [vmem:[%s2342 + $0x78] sm:$0xff]
      %v2359 = vld [vmem:[%s2342 + $0x80] sm:$0xff]
      %v2360 = vld [vmem:[%s2342 + $0x88] sm:$0xff]
      %v2361 = vld [vmem:[%s2342 + $0x90] sm:$0xff]
      %v2362 = vld [vmem:[%s2342 + $0x98] sm:$0xff]
      %v2367 = vrot.slane %v2338, 4
      %v2368 = vrot.slane %v1870, 4
      %v2369 = vsel %vm1532, %v2367, %v2368
      %v2370 = vrot.slane %v2339, 4
      %v2371 = vrot.slane %v1871, 4
      %v2372 = vsel %vm1532, %v2370, %v2371
      %v2373 = vrot.slane %v2340, 4
      %v2374 = vsel %vm1532, %v2368, %v2373
      %v2375 = vrot.slane %v2341, 4
      %v2376 = vsel %vm1532, %v2371, %v2375
      %v2379 = vsel %vm1097, %v2372, 0
      %v2381 = vsel %vm1097, %v2376, 0
      %2383 = vmatprep.subr.mxu0 0.0
      %2384 = vmatpush1.msra.mxu0 %v2343
      %2385 = vmatprep.subr.mxu0 0.0
      %2386 = vmatpush1.msra.mxu0 %v2344
      %2387 = vmatprep.subr.mxu0 0.0
      %2388 = vmatpush1.msra.mxu0 %v2345
      %2389 = vmatprep.subr.mxu0 0.0
      %2390 = vmatpush1.msra.mxu0 %v2346
      %2391 = vmatprep.subr.mxu0 0.0
      %2392 = vmatpush1.msra.mxu0 %v2347
      %2393 = vmatprep.subr.mxu0 0.0
      %2394 = vmatpush1.msra.mxu0 %v2348
      %2395 = vmatprep.subr.mxu0 0.0
      %2396 = vmatpush1.msra.mxu0 %v2349
      %2397 = vmatprep.subr.mxu0 0.0
      %2398 = vmatpush1.msra.mxu0 %v2350
      %2399 = vmatprep.subr.mxu0 0.0
      %2400 = vmatpush1.msra.mxu0 %v2351
      %2401 = vmatprep.subr.mxu0 0.0
      %2402 = vmatpush1.msra.mxu0 %v2352
      %2403 = vmatprep.subr.mxu0 0.0
      %2404 = vmatpush1.msra.mxu0 %v2353
      %2405 = vmatprep.subr.mxu0 0.0
      %2406 = vmatpush1.msra.mxu0 %v2354
      %2407 = vmatprep.subr.mxu0 0.0
      %2408 = vmatpush1.msra.mxu0 %v2355
      %2409 = vmatprep.subr.mxu0 0.0
      %2410 = vmatpush1.msra.mxu0 %v2356
      %2411 = vmatprep.subr.mxu0 0.0
      %2412 = vmatpush1.msra.mxu0 %v2357
      %2413 = vmatprep.subr.mxu0 0.0
      %2414 = vmatpush1.msra.mxu0 %v2358
      %2415 = vmatprep.subr.mxu0 0.0
      %2416 = vmatpush1.msra.mxu0 %v2359
      %2417 = vmatprep.subr.mxu0 0.0
      %2418 = vmatpush1.msra.mxu0 %v2360
      %2419 = vmatprep.subr.mxu0 0.0
      %2420 = vmatpush1.msra.mxu0 %v2361
      %2421 = vmatprep.subr.mxu0 0.0
      %2422 = vmatpush1.msra.mxu0 %v2362
      %2423 = vmatprep.subr.mxu0 0.0
      %2424 = vmatpush1.msra.mxu0 0.0
      %2425 = vmatprep.subr.mxu0 0.0
      %2426 = vmatpush1.msra.mxu0 0.0
      %2427 = vmatprep.subr.mxu0 0.0
      %2428 = vmatpush1.msra.mxu0 0.0
      %2429 = vmatprep.subr.mxu0 0.0
      %2430 = vmatpush1.msra.mxu0 0.0
      %2431 = vmatprep.subr.mxu0 0.0
      %2432 = vmatpush1.msra.mxu0 0.0
      %2433 = vmatprep.subr.mxu0 0.0
      %2434 = vmatpush1.msra.mxu0 0.0
      %2435 = vmatprep.subr.mxu0 0.0
      %2436 = vmatpush1.msra.mxu0 0.0
      %2437 = vmatprep.subr.mxu0 0.0
      %2438 = vmatpush1.msra.mxu0 0.0
      %2439 = vmatprep.subr.mxu0 0.0
      %2440 = vmatpush1.msra.mxu0 0.0
      %2441 = vmatprep.subr.mxu0 0.0
      %2442 = vmatpush1.msra.mxu0 0.0
      %2443 = vmatprep.subr.mxu0 0.0
      %2444 = vmatpush1.msra.mxu0 0.0
      %2445 = vmatprep.subr.mxu0 0.0
      %2446 = vmatpush1.msra.mxu0 0.0
      %2447 = vmatprep.mubr.f32.mxu0 %v2379
      %2448 = vmatmul.mubr.f32.gmra.mrb[0].mxu0 %v2369
      %v2449 = vpop.f32.mrb[0].mxu0
      %v2450 = vadd.f32 0.0, %v2449
      %v2451 = vpop.f32.mrb[0].mxu0
      %2452 = vmatprep.mubr.f32.mxu0 %v2381
      %2453 = vmatmul.mubr.f32.gmra.mrb[0].mxu0 %v2374
      %v2454 = vpop.f32.mrb[0].mxu0
      %v2455 = vadd.f32 0.0, %v2454
      %v2456 = vpop.f32.mrb[0].mxu0
      %2457 = vdwg.mxu0
      %v2458 = vadd.f32 %v2336, %v2450
      %v2459 = vadd.f32 %v2337, %v2455
      %2460 = vst.msk [vmem:[%s276] sm:$0xff] %vm995, %v2458
      %2461 = vst.msk [vmem:[%s276 + $0x8] sm:$0xff] %vm995, %v2459
      %p2462 = scmp.lt.s32.totalorder %s18, 1
      %s2463 = scalar_select %p2462, %s18, 1
      %s2464 = smul.addr %s2463, 2
      %s2465 = smul.addr %s2464, 8
      %s2466 = scalar_lea.vmem %s4, %s2465
      %p2467 = scmp.lt.s32.totalorder %s18, 1
      %s2468 = scalar_select %p2467, %s18, 1
      %s2469 = smul.addr %s2468, 2
      %s2470 = smul.addr %s2469, 8
      %s2471 = scalar_lea.vmem %s5, %s2470
      %p2472 = scmp.lt.s32.totalorder %s18, 1
      %s2473 = scalar_select %p2472, %s18, 1
      %s2474 = smul.addr %s2473, 2
      %s2475 = smul.addr %s2474, 8
      %s2476 = scalar_lea.vmem %s6, %s2475
      // Predicated region
      $region37: #{siren_block_forward.1} parent=35 // pred_check
        %p2477 = pneg %p125
      $region38: #{siren_block_forward.1} parent=35 // pred_check_branch
        %2479 = sbr.rel (%p2477) target = $region40
      $region39: #{siren_block_forward.1} parent=35 // pred_region
        _
      $region40: #{siren_block_forward.1} parent=35 // pred_fallthru
        _
      // Predicated region
      $region41: #{siren_block_forward.1} parent=35 // pred_check
        %p2480 = pneg %p151
      $region42: #{siren_block_forward.1} parent=35 // pred_check_branch
        %2482 = sbr.rel (%p2480) target = $region44
      $region43: #{siren_block_forward.1} parent=35 // pred_region
        _
      $region44: #{siren_block_forward.1} parent=35 // pred_fallthru
        _
      // Predicated region
      $region45: #{siren_block_forward.1} parent=35 // pred_check
        %p2483 = pneg %p177
      $region46: #{siren_block_forward.1} parent=35 // pred_check_branch
        %2485 = sbr.rel (%p2483) target = $region48
      $region47: #{siren_block_forward.1} parent=35 // pred_region
        _
      $region48: #{siren_block_forward.1} parent=35 // pred_fallthru
        _
    $region36: #{siren_block_forward.1} parent=5 // pred_fallthru
      _
    %p2486 = scmp.le.s32.totalorder 2, %s13
    // Predicated region
    $region49: #{siren_block_forward.1} parent=5 // pred_check
      %p2487 = pneg %p2486
    $region50: #{siren_block_forward.1} parent=5 // pred_check_branch
      %2489 = sbr.rel (%p2487) target = $region52
    $region51: #{siren_block_forward.1} parent=5 // pred_region
      %s2490 = ssub.s32 %s13, 2
      // Predicated region
      $region53: #{siren_block_forward.1} parent=51 // pred_check
        %p2491 = pneg %p131
      $region54: #{siren_block_forward.1} parent=51 // pred_check_branch
        %2493 = sbr.rel (%p2491) target = $region56
      $region55: #{siren_block_forward.1} parent=51 // pred_region
        %p2494 = scmp.lt.s32.totalorder %s19, 1
        %s2495 = scalar_select %p2494, %s19, 1
        %s2496 = smul.addr %s2495, 2
        %s2497 = smul.addr %s2496, 8
        %s2498 = scalar_lea.vmem %s4, %s2497
      $region56: #{siren_block_forward.1} parent=51 // pred_fallthru
        _
      // Predicated region
      $region57: #{siren_block_forward.1} parent=51 // pred_check
        %p2499 = pneg %p157
      $region58: #{siren_block_forward.1} parent=51 // pred_check_branch
        %2501 = sbr.rel (%p2499) target = $region60
      $region59: #{siren_block_forward.1} parent=51 // pred_region
        %p2502 = scmp.lt.s32.totalorder %s19, 1
        %s2503 = scalar_select %p2502, %s19, 1
        %s2504 = smul.addr %s2503, 2
        %s2505 = smul.addr %s2504, 8
        %s2506 = scalar_lea.vmem %s5, %s2505
      $region60: #{siren_block_forward.1} parent=51 // pred_fallthru
        _
      // Predicated region
      $region61: #{siren_block_forward.1} parent=51 // pred_check
        %p2507 = pneg %p183
      $region62: #{siren_block_forward.1} parent=51 // pred_check_branch
        %2509 = sbr.rel (%p2507) target = $region64
      $region63: #{siren_block_forward.1} parent=51 // pred_region
        %p2510 = scmp.lt.s32.totalorder %s19, 1
        %s2511 = scalar_select %p2510, %s19, 1
        %s2512 = smul.addr %s2511, 2
        %s2513 = smul.addr %s2512, 8
        %s2514 = scalar_lea.vmem %s6, %s2513
      $region64: #{siren_block_forward.1} parent=51 // pred_fallthru
        _
    $region52: #{siren_block_forward.1} parent=5 // pred_fallthru
      _
  $region6: #{siren_block_forward.1} parent=0 // loop_footer
    %s17 = sadd.s32 1, %s13
  $region7: #{siren_block_forward.1} parent=0 // loop_footer_branch
    %12 = sbr.rel target = $region3
  $region8: #{siren_block_forward.1} parent=0 // loop_exit
    _

</llo_original>
